<compile_context>
chip_gen: v5e
topology: v5e:2x2
jax: 0.10.0
libtpu: 0.0.40
codegen_flags: <defaults>
</compile_context>

<pallas_src>
import functools
import math

import jax
import jax.numpy as jnp
import numpy as np
from jax import lax
from jax.experimental import pallas as pl
from jax.experimental.pallas import tpu as pltpu

HIDDEN = 128


def _round_up(x, m):
    return (x + m - 1) // m * m


def _sigmoid(x):
    # sigmoid(x) == 0.5 * tanh(0.5 * x) + 0.5 : one EUP op + FMA per gate.
    return 0.5 * jnp.tanh(0.5 * x) + 0.5


# ---------------------------------------------------------------------------
# Fused Forecaster kernel: LSTM over T steps + Linear + `future` AR steps.
# PyTorch gate order: i, f, g, o.  Weights pre-transposed to [in, out] and
# pre-cast to bf16; W_ih/W_hh are passed stacked as one [2H, 4H] block.
# ---------------------------------------------------------------------------
def _forecaster_kernel(x_ref, wcat_ref, b_ref, wfc_ref, bfc_ref,
                       o_ref, gx_ref, *, T, Bp, future):
    H = HIDDEN

    wih = wcat_ref[:H, :]          # [H, 4H] bf16 (aligned static sub-tile)
    whh = wcat_ref[H:2 * H, :]     # [H, 4H] bf16
    wfc = wfc_ref[...]             # [H, H]  bf16
    bias = b_ref[...]              # [1, 4H] f32  (b_ih + b_hh)
    bfc = bfc_ref[...]             # [1, H]  f32

    # Hoisted input projection with the bias folded in: one well-shaped
    # [T*Bp,H] x [H,4H] matmul off the serial recurrence path.
    gx_ref[...] = (jnp.dot(x_ref[...], wih,
                           preferred_element_type=jnp.float32) + bias)

    def gates_to_hc(gates, c):
        # Static slice starts at multiples of 128 -> aligned lane views.
        i_g = _sigmoid(gates[:, 0 * H:1 * H])
        f_g = _sigmoid(gates[:, 1 * H:2 * H])
        g_g = jnp.tanh(gates[:, 2 * H:3 * H])
        o_g = _sigmoid(gates[:, 3 * H:4 * H])
        c = f_g * c + i_g * g_g
        h = o_g * jnp.tanh(c)
        return h, c

    def step(t, carry):
        h, c = carry
        row = pl.multiple_of(t * Bp, 8)                       # sublane-aligned
        gates = (gx_ref[pl.ds(row, Bp), :]                    # x@W_ih + bias
                 + jnp.dot(h.astype(jnp.bfloat16), whh,
                           preferred_element_type=jnp.float32))
        return gates_to_hc(gates, c)

    h0 = jnp.zeros((Bp, H), jnp.float32)
    h, c = lax.fori_loop(0, T, step, (h0, h0), unroll=min(T, 8))

    out = jnp.dot(h.astype(jnp.bfloat16), wfc,
                  preferred_element_type=jnp.float32) + bfc
    o_ref[0] = out

    # Autoregressive steps (`future` is a compile-time constant -> static
    # Python unroll).  Gate input fused into ONE [Bp,2H] x [2H,4H] matmul.
    if future:
        w_cat = wcat_ref[...]                                 # [2H, 4H] bf16
        for s in range(1, 1 + future):
            xh = jnp.concatenate(
                [out.astype(jnp.bfloat16), h.astype(jnp.bfloat16)], axis=-1)
            gates = jnp.dot(xh, w_cat,
                            preferred_element_type=jnp.float32) + bias
            h, c = gates_to_hc(gates, c)
            out = jnp.dot(h.astype(jnp.bfloat16), wfc,
                          preferred_element_type=jnp.float32) + bfc
            o_ref[s] = out


@functools.partial(jax.jit, static_argnames=("future",))
def forecaster_pallas(params, inp, future=0):
    """inp: [T, B, 128] f32 (time-major, like `for i in inp` in the module).

    Returns [1 + future, B, 128] f32 (== torch.cat(outputs) in the module).
    """
    T, B, H = inp.shape
    assert H == HIDDEN
    Bp = _round_up(max(B, 8), 8)        # fill all 8 sublanes of every vreg
    n_out = 1 + future

    w_ih, w_hh, b_ih, b_hh = params["lstm"]
    w_fc, b_fc = params["fc"]

    # Pre-cast / pre-pack everything once in the wrapper (halves weight & input
    # DMA, removes one-time in-kernel casts from the exposed prologue).
    x = jnp.pad(inp, ((0, 0), (0, Bp - B), (0, 0)))
    x = x.reshape(T * Bp, H).astype(jnp.bfloat16)
    w_cat = jnp.concatenate([w_ih, w_hh], axis=0).astype(jnp.bfloat16)  # [2H,4H]
    b = (b_ih + b_hh).reshape(1, 4 * H).astype(jnp.float32)
    wfc = w_fc.astype(jnp.bfloat16)
    bfc = b_fc.reshape(1, H).astype(jnp.float32)

    args = [x, w_cat, b, wfc, bfc]
    in_specs = [pl.BlockSpec(a.shape, lambda i, n=a.ndim: (0,) * n)
                for a in args]

    # VMEM budget: inputs (possibly double-buffered even at grid=(1,)),
    # whole-sequence gx scratch, output, plus headroom.  Clamped to the v7x
    # 64 MiB physical ceiling; raises the v5e 16 MiB default when T is large.
    gx_bytes = T * Bp * 4 * H * 4
    arg_bytes = sum(int(np.prod(a.shape)) * a.dtype.itemsize for a in args)
    out_bytes = n_out * Bp * H * 4
    vmem_limit = int(min(max(2 * arg_bytes + gx_bytes + 2 * out_bytes
                             + (4 << 20), 8 << 20), 64 << 20))
    # TODO(synk): for production-length sequences (T in the hundreds), chunk the
    # hoisted projection / gx scratch with emit_pipeline instead of holding the
    # whole sequence in VMEM.

    kernel = functools.partial(_forecaster_kernel, T=T, Bp=Bp, future=future)
    out = pl.pallas_call(
        kernel,
        out_shape=jax.ShapeDtypeStruct((n_out, Bp, H), jnp.float32),
        grid_spec=pltpu.PrefetchScalarGridSpec(
            num_scalar_prefetch=0,
            grid=(1,),
            in_specs=in_specs,
            out_specs=pl.BlockSpec((n_out, Bp, H), lambda i: (0, 0, 0)),
            scratch_shapes=[pltpu.VMEM((T * Bp, 4 * H), jnp.float32)],
        ),
        compiler_params=pltpu.CompilerParams(
            dimension_semantics=("arbitrary",),
            vmem_limit_bytes=vmem_limit),
    )(*args)
    return out[:, :B, :]


# ---------------------------------------------------------------------------
# Parameter init (deterministic). Matches nn.LSTM / nn.Linear default
# U(-1/sqrt(H), 1/sqrt(H)); weights stored pre-transposed [in, out].
# ---------------------------------------------------------------------------
def init_params(key, input_size=128, hidden=HIDDEN):
    k = 1.0 / math.sqrt(hidden)
    keys = jax.random.split(key, 6)
    w_ih = jax.random.uniform(keys[0], (input_size, 4 * hidden), jnp.float32, -k, k)
    w_hh = jax.random.uniform(keys[1], (hidden, 4 * hidden), jnp.float32, -k, k)
    b_ih = jax.random.uniform(keys[2], (4 * hidden,), jnp.float32, -k, k)
    b_hh = jax.random.uniform(keys[3], (4 * hidden,), jnp.float32, -k, k)
    w_fc = jax.random.uniform(keys[4], (hidden, hidden), jnp.float32, -k, k)
    b_fc = jax.random.uniform(keys[5], (hidden,), jnp.float32, -k, k)
    return dict(lstm=(w_ih, w_hh, b_ih, b_hh), fc=(w_fc, b_fc))


# ---------------------------------------------------------------------------
# Pure-JAX reference (mirrors the PyTorch forward).  matmul_dtype lets us check
# both exact-math (bf16-in / f32-acc, same as the kernel) and full f32.
# ---------------------------------------------------------------------------
def forecaster_reference(params, inp, future=0, matmul_dtype=jnp.float32):
    w_ih, w_hh, b_ih, b_hh = params["lstm"]
    w_fc, b_fc = params["fc"]
    T, B, H = inp.shape

    def mm(a, w):
        return jnp.dot(a.astype(matmul_dtype), w.astype(matmul_dtype),
                       preferred_element_type=jnp.float32)

    def cell(x_t, h, c):
        g = mm(x_t, w_ih) + mm(h, w_hh) + b_ih + b_hh
        i_g = jax.nn.sigmoid(g[:, :H])
        f_g = jax.nn.sigmoid(g[:, H:2 * H])
        g_g = jnp.tanh(g[:, 2 * H:3 * H])
        o_g = jax.nn.sigmoid(g[:, 3 * H:])
        c = f_g * c + i_g * g_g
        h = o_g * jnp.tanh(c)
        return h, c

    h = jnp.zeros((B, H), jnp.float32)
    c = jnp.zeros((B, H), jnp.float32)
    for t in range(T):
        h, c = cell(inp[t], h, c)
    out = mm(h, w_fc) + b_fc
    outs = [out]
    for _ in range(future):
        h, c = cell(out, h, c)
        out = mm(h, w_fc) + b_fc
        outs.append(out)
    return jnp.stack(outs, axis=0)


if __name__ == "__main__":
    T, B, input_size = 8, 2, 128

    key = jax.random.PRNGKey(0)
    pk, xk = jax.random.split(key)
    params = init_params(pk, input_size)
    inp = jax.random.normal(xk, (T, B, input_size), jnp.float32)

    for future in (0, 3):
        out = forecaster_pallas(params, inp, future=future)
        jax.block_until_ready(out)
        assert out.shape == (1 + future, B, HIDDEN)

        # Exact-math check: reference using the same bf16-in / f32-accum matmuls.
        ref_bf16 = forecaster_reference(params, inp, future=future,
                                        matmul_dtype=jnp.bfloat16)
        assert np.allclose(np.asarray(out), np.asarray(ref_bf16),
                           rtol=1e-3, atol=1e-3), "mismatch vs bf16 reference"

        # Sanity check vs full-f32 (PyTorch-equivalent) math; only bf16 input
        # rounding separates the two paths.
        ref_f32 = forecaster_reference(params, inp, future=future,
                                       matmul_dtype=jnp.float32)
        assert np.allclose(np.asarray(out), np.asarray(ref_f32),
                           rtol=2e-2, atol=2e-2), "mismatch vs f32 reference"

    print("KERNEL_OK")
</pallas_src>

<mosaic_0001>
module attributes {stable_mosaic.version = 11 : i64} {
  func.func @_forecaster_kernel(%arg0: i32, %arg1: memref<64x128xbf16, #tpu.memory_space<vmem>>, %arg2: memref<256x512xbf16, #tpu.memory_space<vmem>>, %arg3: memref<1x512xf32, #tpu.memory_space<vmem>>, %arg4: memref<128x128xbf16, #tpu.memory_space<vmem>>, %arg5: memref<1x128xf32, #tpu.memory_space<vmem>>, %arg6: memref<1x8x128xf32, #tpu.memory_space<vmem>>, %arg7: memref<64x512xf32, #tpu.memory_space<vmem>>) attributes {dimension_semantics = [#tpu.dimension_semantics<arbitrary>], iteration_bounds = array<i64: 1>, scalar_prefetch = 0 : i64, scratch_operands = 1 : i64, tpu.core_type = #tpu.core_type<tc>, window_params = [{pipeline_mode = #tpu.pipeline_mode<synchronous>, transform_indices = @transform_0, window_bounds = array<i64: 64, 128>}, {pipeline_mode = #tpu.pipeline_mode<synchronous>, transform_indices = @transform_1, window_bounds = array<i64: 256, 512>}, {pipeline_mode = #tpu.pipeline_mode<synchronous>, transform_indices = @transform_2, window_bounds = array<i64: 1, 512>}, {pipeline_mode = #tpu.pipeline_mode<synchronous>, transform_indices = @transform_3, window_bounds = array<i64: 128, 128>}, {pipeline_mode = #tpu.pipeline_mode<synchronous>, transform_indices = @transform_4, window_bounds = array<i64: 1, 128>}, {pipeline_mode = #tpu.pipeline_mode<synchronous>, transform_indices = @transform_5, window_bounds = array<i64: 1, 8, 128>}]} {
    %c0 = arith.constant 0 : index
    %c0_0 = arith.constant 0 : index
    %0 = vector.load %arg2[%c0, %c0_0] : memref<256x512xbf16, #tpu.memory_space<vmem>>, vector<128x512xbf16>
    %c128 = arith.constant 128 : index
    %c0_1 = arith.constant 0 : index
    %1 = vector.load %arg2[%c128, %c0_1] : memref<256x512xbf16, #tpu.memory_space<vmem>>, vector<128x512xbf16>
    %c0_2 = arith.constant 0 : index
    %c0_3 = arith.constant 0 : index
    %2 = vector.load %arg4[%c0_2, %c0_3] : memref<128x128xbf16, #tpu.memory_space<vmem>>, vector<128x128xbf16>
    %c0_4 = arith.constant 0 : index
    %c0_5 = arith.constant 0 : index
    %3 = vector.load %arg3[%c0_4, %c0_5] : memref<1x512xf32, #tpu.memory_space<vmem>>, vector<1x512xf32>
    %c0_6 = arith.constant 0 : index
    %c0_7 = arith.constant 0 : index
    %4 = vector.load %arg5[%c0_6, %c0_7] : memref<1x128xf32, #tpu.memory_space<vmem>>, vector<1x128xf32>
    %c0_8 = arith.constant 0 : index
    %c0_9 = arith.constant 0 : index
    %5 = vector.load %arg1[%c0_8, %c0_9] : memref<64x128xbf16, #tpu.memory_space<vmem>>, vector<64x128xbf16>
    %cst = arith.constant dense<0.000000e+00> : vector<64x512xf32>
    %6 = tpu.matmul %5, %0, %cst {dimension_numbers = #tpu.dot_dimension_numbers<[1], [0], [0], [1], [0, 0, 1, 1], [], []>} : vector<64x128xbf16>, vector<128x512xbf16>, vector<64x512xf32> -> vector<64x512xf32>
    %7 = vector.broadcast %3 : vector<1x512xf32> to vector<64x512xf32>
    %8 = arith.addf %6, %7 : vector<64x512xf32>
    %c0_10 = arith.constant 0 : index
    %c0_11 = arith.constant 0 : index
    %9 = vector.load %arg7[%c0_10, %c0_11] : memref<64x512xf32, #tpu.memory_space<vmem>>, vector<64x512xf32>
    tpu.vector_store %arg7[%c0_10, %c0_11], %8 {strides = array<i32>} : memref<64x512xf32, #tpu.memory_space<vmem>>, vector<64x512xf32>,
    %cst_12 = arith.constant 0.000000e+00 : f32
    %10 = vector.broadcast %cst_12 : f32 to vector<8x128xf32>
    %c0_i32 = arith.constant 0 : i32
    %c8_i32 = arith.constant 8 : i32
    %11 = arith.muli %c0_i32, %c8_i32 : i32
    %12 = tpu.assume_multiple %11, 8 : i32
    %13 = arith.index_cast %12 : i32 to index
    %c0_13 = arith.constant 0 : index
    %14 = vector.load %arg7[%13, %c0_13] : memref<64x512xf32, #tpu.memory_space<vmem>>, vector<8x512xf32>
    %15 = arith.truncf %10 : vector<8x128xf32> to vector<8x128xbf16>
    %cst_14 = arith.constant dense<0.000000e+00> : vector<8x512xf32>
    %16 = tpu.matmul %15, %1, %cst_14 {dimension_numbers = #tpu.dot_dimension_numbers<[1], [0], [0], [1], [0, 0, 1, 1], [], []>} : vector<8x128xbf16>, vector<128x512xbf16>, vector<8x512xf32> -> vector<8x512xf32>
    %17 = arith.addf %14, %16 : vector<8x512xf32>
    %18 = vector.extract_strided_slice %17 {offsets = [0, 0], sizes = [8, 128], strides = [1, 1]} : vector<8x512xf32> to vector<8x128xf32>
    %cst_15 = arith.constant 5.000000e-01 : f32
    %19 = vector.broadcast %cst_15 : f32 to vector<8x128xf32>
    %20 = arith.mulf %19, %18 : vector<8x128xf32>
    %21 = math.tanh %20 : vector<8x128xf32>
    %cst_16 = arith.constant 5.000000e-01 : f32
    %22 = vector.broadcast %cst_16 : f32 to vector<8x128xf32>
    %23 = arith.mulf %22, %21 : vector<8x128xf32>
    %cst_17 = arith.constant 5.000000e-01 : f32
    %24 = vector.broadcast %cst_17 : f32 to vector<8x128xf32>
    %25 = arith.addf %23, %24 : vector<8x128xf32>
    %26 = vector.extract_strided_slice %17 {offsets = [0, 128], sizes = [8, 128], strides = [1, 1]} : vector<8x512xf32> to vector<8x128xf32>
    %cst_18 = arith.constant 5.000000e-01 : f32
    %27 = vector.broadcast %cst_18 : f32 to vector<8x128xf32>
    %28 = arith.mulf %27, %26 : vector<8x128xf32>
    %29 = math.tanh %28 : vector<8x128xf32>
    %cst_19 = arith.constant 5.000000e-01 : f32
    %30 = vector.broadcast %cst_19 : f32 to vector<8x128xf32>
    %31 = arith.mulf %30, %29 : vector<8x128xf32>
    %cst_20 = arith.constant 5.000000e-01 : f32
    %32 = vector.broadcast %cst_20 : f32 to vector<8x128xf32>
    %33 = arith.addf %31, %32 : vector<8x128xf32>
    %34 = vector.extract_strided_slice %17 {offsets = [0, 256], sizes = [8, 128], strides = [1, 1]} : vector<8x512xf32> to vector<8x128xf32>
    %35 = math.tanh %34 : vector<8x128xf32>
    %36 = vector.extract_strided_slice %17 {offsets = [0, 384], sizes = [8, 128], strides = [1, 1]} : vector<8x512xf32> to vector<8x128xf32>
    %cst_21 = arith.constant 5.000000e-01 : f32
    %37 = vector.broadcast %cst_21 : f32 to vector<8x128xf32>
    %38 = arith.mulf %37, %36 : vector<8x128xf32>
    %39 = math.tanh %38 : vector<8x128xf32>
    %cst_22 = arith.constant 5.000000e-01 : f32
    %40 = vector.broadcast %cst_22 : f32 to vector<8x128xf32>
    %41 = arith.mulf %40, %39 : vector<8x128xf32>
    %cst_23 = arith.constant 5.000000e-01 : f32
    %42 = vector.broadcast %cst_23 : f32 to vector<8x128xf32>
    %43 = arith.addf %41, %42 : vector<8x128xf32>
    %44 = arith.mulf %33, %10 : vector<8x128xf32>
    %45 = arith.mulf %25, %35 : vector<8x128xf32>
    %46 = arith.addf %44, %45 : vector<8x128xf32>
    %47 = math.tanh %46 : vector<8x128xf32>
    %48 = arith.mulf %43, %47 : vector<8x128xf32>
    %c1_i32 = arith.constant 1 : i32
    %c8_i32_24 = arith.constant 8 : i32
    %49 = arith.muli %c1_i32, %c8_i32_24 : i32
    %50 = tpu.assume_multiple %49, 8 : i32
    %51 = arith.index_cast %50 : i32 to index
    %c0_25 = arith.constant 0 : index
    %52 = vector.load %arg7[%51, %c0_25] : memref<64x512xf32, #tpu.memory_space<vmem>>, vector<8x512xf32>
    %53 = arith.truncf %48 : vector<8x128xf32> to vector<8x128xbf16>
    %cst_26 = arith.constant dense<0.000000e+00> : vector<8x512xf32>
    %54 = tpu.matmul %53, %1, %cst_26 {dimension_numbers = #tpu.dot_dimension_numbers<[1], [0], [0], [1], [0, 0, 1, 1], [], []>} : vector<8x128xbf16>, vector<128x512xbf16>, vector<8x512xf32> -> vector<8x512xf32>
    %55 = arith.addf %52, %54 : vector<8x512xf32>
    %56 = vector.extract_strided_slice %55 {offsets = [0, 0], sizes = [8, 128], strides = [1, 1]} : vector<8x512xf32> to vector<8x128xf32>
    %cst_27 = arith.constant 5.000000e-01 : f32
    %57 = vector.broadcast %cst_27 : f32 to vector<8x128xf32>
    %58 = arith.mulf %57, %56 : vector<8x128xf32>
    %59 = math.tanh %58 : vector<8x128xf32>
    %cst_28 = arith.constant 5.000000e-01 : f32
    %60 = vector.broadcast %cst_28 : f32 to vector<8x128xf32>
    %61 = arith.mulf %60, %59 : vector<8x128xf32>
    %cst_29 = arith.constant 5.000000e-01 : f32
    %62 = vector.broadcast %cst_29 : f32 to vector<8x128xf32>
    %63 = arith.addf %61, %62 : vector<8x128xf32>
    %64 = vector.extract_strided_slice %55 {offsets = [0, 128], sizes = [8, 128], strides = [1, 1]} : vector<8x512xf32> to vector<8x128xf32>
    %cst_30 = arith.constant 5.000000e-01 : f32
    %65 = vector.broadcast %cst_30 : f32 to vector<8x128xf32>
    %66 = arith.mulf %65, %64 : vector<8x128xf32>
    %67 = math.tanh %66 : vector<8x128xf32>
    %cst_31 = arith.constant 5.000000e-01 : f32
    %68 = vector.broadcast %cst_31 : f32 to vector<8x128xf32>
    %69 = arith.mulf %68, %67 : vector<8x128xf32>
    %cst_32 = arith.constant 5.000000e-01 : f32
    %70 = vector.broadcast %cst_32 : f32 to vector<8x128xf32>
    %71 = arith.addf %69, %70 : vector<8x128xf32>
    %72 = vector.extract_strided_slice %55 {offsets = [0, 256], sizes = [8, 128], strides = [1, 1]} : vector<8x512xf32> to vector<8x128xf32>
    %73 = math.tanh %72 : vector<8x128xf32>
    %74 = vector.extract_strided_slice %55 {offsets = [0, 384], sizes = [8, 128], strides = [1, 1]} : vector<8x512xf32> to vector<8x128xf32>
    %cst_33 = arith.constant 5.000000e-01 : f32
    %75 = vector.broadcast %cst_33 : f32 to vector<8x128xf32>
    %76 = arith.mulf %75, %74 : vector<8x128xf32>
    %77 = math.tanh %76 : vector<8x128xf32>
    %cst_34 = arith.constant 5.000000e-01 : f32
    %78 = vector.broadcast %cst_34 : f32 to vector<8x128xf32>
    %79 = arith.mulf %78, %77 : vector<8x128xf32>
    %cst_35 = arith.constant 5.000000e-01 : f32
    %80 = vector.broadcast %cst_35 : f32 to vector<8x128xf32>
    %81 = arith.addf %79, %80 : vector<8x128xf32>
    %82 = arith.mulf %71, %46 : vector<8x128xf32>
    %83 = arith.mulf %63, %73 : vector<8x128xf32>
    %84 = arith.addf %82, %83 : vector<8x128xf32>
    %85 = math.tanh %84 : vector<8x128xf32>
    %86 = arith.mulf %81, %85 : vector<8x128xf32>
    %c2_i32 = arith.constant 2 : i32
    %c8_i32_36 = arith.constant 8 : i32
    %87 = arith.muli %c2_i32, %c8_i32_36 : i32
    %88 = tpu.assume_multiple %87, 8 : i32
    %89 = arith.index_cast %88 : i32 to index
    %c0_37 = arith.constant 0 : index
    %90 = vector.load %arg7[%89, %c0_37] : memref<64x512xf32, #tpu.memory_space<vmem>>, vector<8x512xf32>
    %91 = arith.truncf %86 : vector<8x128xf32> to vector<8x128xbf16>
    %cst_38 = arith.constant dense<0.000000e+00> : vector<8x512xf32>
    %92 = tpu.matmul %91, %1, %cst_38 {dimension_numbers = #tpu.dot_dimension_numbers<[1], [0], [0], [1], [0, 0, 1, 1], [], []>} : vector<8x128xbf16>, vector<128x512xbf16>, vector<8x512xf32> -> vector<8x512xf32>
    %93 = arith.addf %90, %92 : vector<8x512xf32>
    %94 = vector.extract_strided_slice %93 {offsets = [0, 0], sizes = [8, 128], strides = [1, 1]} : vector<8x512xf32> to vector<8x128xf32>
    %cst_39 = arith.constant 5.000000e-01 : f32
    %95 = vector.broadcast %cst_39 : f32 to vector<8x128xf32>
    %96 = arith.mulf %95, %94 : vector<8x128xf32>
    %97 = math.tanh %96 : vector<8x128xf32>
    %cst_40 = arith.constant 5.000000e-01 : f32
    %98 = vector.broadcast %cst_40 : f32 to vector<8x128xf32>
    %99 = arith.mulf %98, %97 : vector<8x128xf32>
    %cst_41 = arith.constant 5.000000e-01 : f32
    %100 = vector.broadcast %cst_41 : f32 to vector<8x128xf32>
    %101 = arith.addf %99, %100 : vector<8x128xf32>
    %102 = vector.extract_strided_slice %93 {offsets = [0, 128], sizes = [8, 128], strides = [1, 1]} : vector<8x512xf32> to vector<8x128xf32>
    %cst_42 = arith.constant 5.000000e-01 : f32
    %103 = vector.broadcast %cst_42 : f32 to vector<8x128xf32>
    %104 = arith.mulf %103, %102 : vector<8x128xf32>
    %105 = math.tanh %104 : vector<8x128xf32>
    %cst_43 = arith.constant 5.000000e-01 : f32
    %106 = vector.broadcast %cst_43 : f32 to vector<8x128xf32>
    %107 = arith.mulf %106, %105 : vector<8x128xf32>
    %cst_44 = arith.constant 5.000000e-01 : f32
    %108 = vector.broadcast %cst_44 : f32 to vector<8x128xf32>
    %109 = arith.addf %107, %108 : vector<8x128xf32>
    %110 = vector.extract_strided_slice %93 {offsets = [0, 256], sizes = [8, 128], strides = [1, 1]} : vector<8x512xf32> to vector<8x128xf32>
    %111 = math.tanh %110 : vector<8x128xf32>
    %112 = vector.extract_strided_slice %93 {offsets = [0, 384], sizes = [8, 128], strides = [1, 1]} : vector<8x512xf32> to vector<8x128xf32>
    %cst_45 = arith.constant 5.000000e-01 : f32
    %113 = vector.broadcast %cst_45 : f32 to vector<8x128xf32>
    %114 = arith.mulf %113, %112 : vector<8x128xf32>
    %115 = math.tanh %114 : vector<8x128xf32>
    %cst_46 = arith.constant 5.000000e-01 : f32
    %116 = vector.broadcast %cst_46 : f32 to vector<8x128xf32>
    %117 = arith.mulf %116, %115 : vector<8x128xf32>
    %cst_47 = arith.constant 5.000000e-01 : f32
    %118 = vector.broadcast %cst_47 : f32 to vector<8x128xf32>
    %119 = arith.addf %117, %118 : vector<8x128xf32>
    %120 = arith.mulf %109, %84 : vector<8x128xf32>
    %121 = arith.mulf %101, %111 : vector<8x128xf32>
    %122 = arith.addf %120, %121 : vector<8x128xf32>
    %123 = math.tanh %122 : vector<8x128xf32>
    %124 = arith.mulf %119, %123 : vector<8x128xf32>
    %c3_i32 = arith.constant 3 : i32
    %c8_i32_48 = arith.constant 8 : i32
    %125 = arith.muli %c3_i32, %c8_i32_48 : i32
    %126 = tpu.assume_multiple %125, 8 : i32
    %127 = arith.index_cast %126 : i32 to index
    %c0_49 = arith.constant 0 : index
    %128 = vector.load %arg7[%127, %c0_49] : memref<64x512xf32, #tpu.memory_space<vmem>>, vector<8x512xf32>
    %129 = arith.truncf %124 : vector<8x128xf32> to vector<8x128xbf16>
    %cst_50 = arith.constant dense<0.000000e+00> : vector<8x512xf32>
    %130 = tpu.matmul %129, %1, %cst_50 {dimension_numbers = #tpu.dot_dimension_numbers<[1], [0], [0], [1], [0, 0, 1, 1], [], []>} : vector<8x128xbf16>, vector<128x512xbf16>, vector<8x512xf32> -> vector<8x512xf32>
    %131 = arith.addf %128, %130 : vector<8x512xf32>
    %132 = vector.extract_strided_slice %131 {offsets = [0, 0], sizes = [8, 128], strides = [1, 1]} : vector<8x512xf32> to vector<8x128xf32>
    %cst_51 = arith.constant 5.000000e-01 : f32
    %133 = vector.broadcast %cst_51 : f32 to vector<8x128xf32>
    %134 = arith.mulf %133, %132 : vector<8x128xf32>
    %135 = math.tanh %134 : vector<8x128xf32>
    %cst_52 = arith.constant 5.000000e-01 : f32
    %136 = vector.broadcast %cst_52 : f32 to vector<8x128xf32>
    %137 = arith.mulf %136, %135 : vector<8x128xf32>
    %cst_53 = arith.constant 5.000000e-01 : f32
    %138 = vector.broadcast %cst_53 : f32 to vector<8x128xf32>
    %139 = arith.addf %137, %138 : vector<8x128xf32>
    %140 = vector.extract_strided_slice %131 {offsets = [0, 128], sizes = [8, 128], strides = [1, 1]} : vector<8x512xf32> to vector<8x128xf32>
    %cst_54 = arith.constant 5.000000e-01 : f32
    %141 = vector.broadcast %cst_54 : f32 to vector<8x128xf32>
    %142 = arith.mulf %141, %140 : vector<8x128xf32>
    %143 = math.tanh %142 : vector<8x128xf32>
    %cst_55 = arith.constant 5.000000e-01 : f32
    %144 = vector.broadcast %cst_55 : f32 to vector<8x128xf32>
    %145 = arith.mulf %144, %143 : vector<8x128xf32>
    %cst_56 = arith.constant 5.000000e-01 : f32
    %146 = vector.broadcast %cst_56 : f32 to vector<8x128xf32>
    %147 = arith.addf %145, %146 : vector<8x128xf32>
    %148 = vector.extract_strided_slice %131 {offsets = [0, 256], sizes = [8, 128], strides = [1, 1]} : vector<8x512xf32> to vector<8x128xf32>
    %149 = math.tanh %148 : vector<8x128xf32>
    %150 = vector.extract_strided_slice %131 {offsets = [0, 384], sizes = [8, 128], strides = [1, 1]} : vector<8x512xf32> to vector<8x128xf32>
    %cst_57 = arith.constant 5.000000e-01 : f32
    %151 = vector.broadcast %cst_57 : f32 to vector<8x128xf32>
    %152 = arith.mulf %151, %150 : vector<8x128xf32>
    %153 = math.tanh %152 : vector<8x128xf32>
    %cst_58 = arith.constant 5.000000e-01 : f32
    %154 = vector.broadcast %cst_58 : f32 to vector<8x128xf32>
    %155 = arith.mulf %154, %153 : vector<8x128xf32>
    %cst_59 = arith.constant 5.000000e-01 : f32
    %156 = vector.broadcast %cst_59 : f32 to vector<8x128xf32>
    %157 = arith.addf %155, %156 : vector<8x128xf32>
    %158 = arith.mulf %147, %122 : vector<8x128xf32>
    %159 = arith.mulf %139, %149 : vector<8x128xf32>
    %160 = arith.addf %158, %159 : vector<8x128xf32>
    %161 = math.tanh %160 : vector<8x128xf32>
    %162 = arith.mulf %157, %161 : vector<8x128xf32>
    %c4_i32 = arith.constant 4 : i32
    %c8_i32_60 = arith.constant 8 : i32
    %163 = arith.muli %c4_i32, %c8_i32_60 : i32
    %164 = tpu.assume_multiple %163, 8 : i32
    %165 = arith.index_cast %164 : i32 to index
    %c0_61 = arith.constant 0 : index
    %166 = vector.load %arg7[%165, %c0_61] : memref<64x512xf32, #tpu.memory_space<vmem>>, vector<8x512xf32>
    %167 = arith.truncf %162 : vector<8x128xf32> to vector<8x128xbf16>
    %cst_62 = arith.constant dense<0.000000e+00> : vector<8x512xf32>
    %168 = tpu.matmul %167, %1, %cst_62 {dimension_numbers = #tpu.dot_dimension_numbers<[1], [0], [0], [1], [0, 0, 1, 1], [], []>} : vector<8x128xbf16>, vector<128x512xbf16>, vector<8x512xf32> -> vector<8x512xf32>
    %169 = arith.addf %166, %168 : vector<8x512xf32>
    %170 = vector.extract_strided_slice %169 {offsets = [0, 0], sizes = [8, 128], strides = [1, 1]} : vector<8x512xf32> to vector<8x128xf32>
    %cst_63 = arith.constant 5.000000e-01 : f32
    %171 = vector.broadcast %cst_63 : f32 to vector<8x128xf32>
    %172 = arith.mulf %171, %170 : vector<8x128xf32>
    %173 = math.tanh %172 : vector<8x128xf32>
    %cst_64 = arith.constant 5.000000e-01 : f32
    %174 = vector.broadcast %cst_64 : f32 to vector<8x128xf32>
    %175 = arith.mulf %174, %173 : vector<8x128xf32>
    %cst_65 = arith.constant 5.000000e-01 : f32
    %176 = vector.broadcast %cst_65 : f32 to vector<8x128xf32>
    %177 = arith.addf %175, %176 : vector<8x128xf32>
    %178 = vector.extract_strided_slice %169 {offsets = [0, 128], sizes = [8, 128], strides = [1, 1]} : vector<8x512xf32> to vector<8x128xf32>
    %cst_66 = arith.constant 5.000000e-01 : f32
    %179 = vector.broadcast %cst_66 : f32 to vector<8x128xf32>
    %180 = arith.mulf %179, %178 : vector<8x128xf32>
    %181 = math.tanh %180 : vector<8x128xf32>
    %cst_67 = arith.constant 5.000000e-01 : f32
    %182 = vector.broadcast %cst_67 : f32 to vector<8x128xf32>
    %183 = arith.mulf %182, %181 : vector<8x128xf32>
    %cst_68 = arith.constant 5.000000e-01 : f32
    %184 = vector.broadcast %cst_68 : f32 to vector<8x128xf32>
    %185 = arith.addf %183, %184 : vector<8x128xf32>
    %186 = vector.extract_strided_slice %169 {offsets = [0, 256], sizes = [8, 128], strides = [1, 1]} : vector<8x512xf32> to vector<8x128xf32>
    %187 = math.tanh %186 : vector<8x128xf32>
    %188 = vector.extract_strided_slice %169 {offsets = [0, 384], sizes = [8, 128], strides = [1, 1]} : vector<8x512xf32> to vector<8x128xf32>
    %cst_69 = arith.constant 5.000000e-01 : f32
    %189 = vector.broadcast %cst_69 : f32 to vector<8x128xf32>
    %190 = arith.mulf %189, %188 : vector<8x128xf32>
    %191 = math.tanh %190 : vector<8x128xf32>
    %cst_70 = arith.constant 5.000000e-01 : f32
    %192 = vector.broadcast %cst_70 : f32 to vector<8x128xf32>
    %193 = arith.mulf %192, %191 : vector<8x128xf32>
    %cst_71 = arith.constant 5.000000e-01 : f32
    %194 = vector.broadcast %cst_71 : f32 to vector<8x128xf32>
    %195 = arith.addf %193, %194 : vector<8x128xf32>
    %196 = arith.mulf %185, %160 : vector<8x128xf32>
    %197 = arith.mulf %177, %187 : vector<8x128xf32>
    %198 = arith.addf %196, %197 : vector<8x128xf32>
    %199 = math.tanh %198 : vector<8x128xf32>
    %200 = arith.mulf %195, %199 : vector<8x128xf32>
    %c5_i32 = arith.constant 5 : i32
    %c8_i32_72 = arith.constant 8 : i32
    %201 = arith.muli %c5_i32, %c8_i32_72 : i32
    %202 = tpu.assume_multiple %201, 8 : i32
    %203 = arith.index_cast %202 : i32 to index
    %c0_73 = arith.constant 0 : index
    %204 = vector.load %arg7[%203, %c0_73] : memref<64x512xf32, #tpu.memory_space<vmem>>, vector<8x512xf32>
    %205 = arith.truncf %200 : vector<8x128xf32> to vector<8x128xbf16>
    %cst_74 = arith.constant dense<0.000000e+00> : vector<8x512xf32>
    %206 = tpu.matmul %205, %1, %cst_74 {dimension_numbers = #tpu.dot_dimension_numbers<[1], [0], [0], [1], [0, 0, 1, 1], [], []>} : vector<8x128xbf16>, vector<128x512xbf16>, vector<8x512xf32> -> vector<8x512xf32>
    %207 = arith.addf %204, %206 : vector<8x512xf32>
    %208 = vector.extract_strided_slice %207 {offsets = [0, 0], sizes = [8, 128], strides = [1, 1]} : vector<8x512xf32> to vector<8x128xf32>
    %cst_75 = arith.constant 5.000000e-01 : f32
    %209 = vector.broadcast %cst_75 : f32 to vector<8x128xf32>
    %210 = arith.mulf %209, %208 : vector<8x128xf32>
    %211 = math.tanh %210 : vector<8x128xf32>
    %cst_76 = arith.constant 5.000000e-01 : f32
    %212 = vector.broadcast %cst_76 : f32 to vector<8x128xf32>
    %213 = arith.mulf %212, %211 : vector<8x128xf32>
    %cst_77 = arith.constant 5.000000e-01 : f32
    %214 = vector.broadcast %cst_77 : f32 to vector<8x128xf32>
    %215 = arith.addf %213, %214 : vector<8x128xf32>
    %216 = vector.extract_strided_slice %207 {offsets = [0, 128], sizes = [8, 128], strides = [1, 1]} : vector<8x512xf32> to vector<8x128xf32>
    %cst_78 = arith.constant 5.000000e-01 : f32
    %217 = vector.broadcast %cst_78 : f32 to vector<8x128xf32>
    %218 = arith.mulf %217, %216 : vector<8x128xf32>
    %219 = math.tanh %218 : vector<8x128xf32>
    %cst_79 = arith.constant 5.000000e-01 : f32
    %220 = vector.broadcast %cst_79 : f32 to vector<8x128xf32>
    %221 = arith.mulf %220, %219 : vector<8x128xf32>
    %cst_80 = arith.constant 5.000000e-01 : f32
    %222 = vector.broadcast %cst_80 : f32 to vector<8x128xf32>
    %223 = arith.addf %221, %222 : vector<8x128xf32>
    %224 = vector.extract_strided_slice %207 {offsets = [0, 256], sizes = [8, 128], strides = [1, 1]} : vector<8x512xf32> to vector<8x128xf32>
    %225 = math.tanh %224 : vector<8x128xf32>
    %226 = vector.extract_strided_slice %207 {offsets = [0, 384], sizes = [8, 128], strides = [1, 1]} : vector<8x512xf32> to vector<8x128xf32>
    %cst_81 = arith.constant 5.000000e-01 : f32
    %227 = vector.broadcast %cst_81 : f32 to vector<8x128xf32>
    %228 = arith.mulf %227, %226 : vector<8x128xf32>
    %229 = math.tanh %228 : vector<8x128xf32>
    %cst_82 = arith.constant 5.000000e-01 : f32
    %230 = vector.broadcast %cst_82 : f32 to vector<8x128xf32>
    %231 = arith.mulf %230, %229 : vector<8x128xf32>
    %cst_83 = arith.constant 5.000000e-01 : f32
    %232 = vector.broadcast %cst_83 : f32 to vector<8x128xf32>
    %233 = arith.addf %231, %232 : vector<8x128xf32>
    %234 = arith.mulf %223, %198 : vector<8x128xf32>
    %235 = arith.mulf %215, %225 : vector<8x128xf32>
    %236 = arith.addf %234, %235 : vector<8x128xf32>
    %237 = math.tanh %236 : vector<8x128xf32>
    %238 = arith.mulf %233, %237 : vector<8x128xf32>
    %c6_i32 = arith.constant 6 : i32
    %c8_i32_84 = arith.constant 8 : i32
    %239 = arith.muli %c6_i32, %c8_i32_84 : i32
    %240 = tpu.assume_multiple %239, 8 : i32
    %241 = arith.index_cast %240 : i32 to index
    %c0_85 = arith.constant 0 : index
    %242 = vector.load %arg7[%241, %c0_85] : memref<64x512xf32, #tpu.memory_space<vmem>>, vector<8x512xf32>
    %243 = arith.truncf %238 : vector<8x128xf32> to vector<8x128xbf16>
    %cst_86 = arith.constant dense<0.000000e+00> : vector<8x512xf32>
    %244 = tpu.matmul %243, %1, %cst_86 {dimension_numbers = #tpu.dot_dimension_numbers<[1], [0], [0], [1], [0, 0, 1, 1], [], []>} : vector<8x128xbf16>, vector<128x512xbf16>, vector<8x512xf32> -> vector<8x512xf32>
    %245 = arith.addf %242, %244 : vector<8x512xf32>
    %246 = vector.extract_strided_slice %245 {offsets = [0, 0], sizes = [8, 128], strides = [1, 1]} : vector<8x512xf32> to vector<8x128xf32>
    %cst_87 = arith.constant 5.000000e-01 : f32
    %247 = vector.broadcast %cst_87 : f32 to vector<8x128xf32>
    %248 = arith.mulf %247, %246 : vector<8x128xf32>
    %249 = math.tanh %248 : vector<8x128xf32>
    %cst_88 = arith.constant 5.000000e-01 : f32
    %250 = vector.broadcast %cst_88 : f32 to vector<8x128xf32>
    %251 = arith.mulf %250, %249 : vector<8x128xf32>
    %cst_89 = arith.constant 5.000000e-01 : f32
    %252 = vector.broadcast %cst_89 : f32 to vector<8x128xf32>
    %253 = arith.addf %251, %252 : vector<8x128xf32>
    %254 = vector.extract_strided_slice %245 {offsets = [0, 128], sizes = [8, 128], strides = [1, 1]} : vector<8x512xf32> to vector<8x128xf32>
    %cst_90 = arith.constant 5.000000e-01 : f32
    %255 = vector.broadcast %cst_90 : f32 to vector<8x128xf32>
    %256 = arith.mulf %255, %254 : vector<8x128xf32>
    %257 = math.tanh %256 : vector<8x128xf32>
    %cst_91 = arith.constant 5.000000e-01 : f32
    %258 = vector.broadcast %cst_91 : f32 to vector<8x128xf32>
    %259 = arith.mulf %258, %257 : vector<8x128xf32>
    %cst_92 = arith.constant 5.000000e-01 : f32
    %260 = vector.broadcast %cst_92 : f32 to vector<8x128xf32>
    %261 = arith.addf %259, %260 : vector<8x128xf32>
    %262 = vector.extract_strided_slice %245 {offsets = [0, 256], sizes = [8, 128], strides = [1, 1]} : vector<8x512xf32> to vector<8x128xf32>
    %263 = math.tanh %262 : vector<8x128xf32>
    %264 = vector.extract_strided_slice %245 {offsets = [0, 384], sizes = [8, 128], strides = [1, 1]} : vector<8x512xf32> to vector<8x128xf32>
    %cst_93 = arith.constant 5.000000e-01 : f32
    %265 = vector.broadcast %cst_93 : f32 to vector<8x128xf32>
    %266 = arith.mulf %265, %264 : vector<8x128xf32>
    %267 = math.tanh %266 : vector<8x128xf32>
    %cst_94 = arith.constant 5.000000e-01 : f32
    %268 = vector.broadcast %cst_94 : f32 to vector<8x128xf32>
    %269 = arith.mulf %268, %267 : vector<8x128xf32>
    %cst_95 = arith.constant 5.000000e-01 : f32
    %270 = vector.broadcast %cst_95 : f32 to vector<8x128xf32>
    %271 = arith.addf %269, %270 : vector<8x128xf32>
    %272 = arith.mulf %261, %236 : vector<8x128xf32>
    %273 = arith.mulf %253, %263 : vector<8x128xf32>
    %274 = arith.addf %272, %273 : vector<8x128xf32>
    %275 = math.tanh %274 : vector<8x128xf32>
    %276 = arith.mulf %271, %275 : vector<8x128xf32>
    %c7_i32 = arith.constant 7 : i32
    %c8_i32_96 = arith.constant 8 : i32
    %277 = arith.muli %c7_i32, %c8_i32_96 : i32
    %278 = tpu.assume_multiple %277, 8 : i32
    %279 = arith.index_cast %278 : i32 to index
    %c0_97 = arith.constant 0 : index
    %280 = vector.load %arg7[%279, %c0_97] : memref<64x512xf32, #tpu.memory_space<vmem>>, vector<8x512xf32>
    %281 = arith.truncf %276 : vector<8x128xf32> to vector<8x128xbf16>
    %cst_98 = arith.constant dense<0.000000e+00> : vector<8x512xf32>
    %282 = tpu.matmul %281, %1, %cst_98 {dimension_numbers = #tpu.dot_dimension_numbers<[1], [0], [0], [1], [0, 0, 1, 1], [], []>} : vector<8x128xbf16>, vector<128x512xbf16>, vector<8x512xf32> -> vector<8x512xf32>
    %283 = arith.addf %280, %282 : vector<8x512xf32>
    %284 = vector.extract_strided_slice %283 {offsets = [0, 0], sizes = [8, 128], strides = [1, 1]} : vector<8x512xf32> to vector<8x128xf32>
    %cst_99 = arith.constant 5.000000e-01 : f32
    %285 = vector.broadcast %cst_99 : f32 to vector<8x128xf32>
    %286 = arith.mulf %285, %284 : vector<8x128xf32>
    %287 = math.tanh %286 : vector<8x128xf32>
    %cst_100 = arith.constant 5.000000e-01 : f32
    %288 = vector.broadcast %cst_100 : f32 to vector<8x128xf32>
    %289 = arith.mulf %288, %287 : vector<8x128xf32>
    %cst_101 = arith.constant 5.000000e-01 : f32
    %290 = vector.broadcast %cst_101 : f32 to vector<8x128xf32>
    %291 = arith.addf %289, %290 : vector<8x128xf32>
    %292 = vector.extract_strided_slice %283 {offsets = [0, 128], sizes = [8, 128], strides = [1, 1]} : vector<8x512xf32> to vector<8x128xf32>
    %cst_102 = arith.constant 5.000000e-01 : f32
    %293 = vector.broadcast %cst_102 : f32 to vector<8x128xf32>
    %294 = arith.mulf %293, %292 : vector<8x128xf32>
    %295 = math.tanh %294 : vector<8x128xf32>
    %cst_103 = arith.constant 5.000000e-01 : f32
    %296 = vector.broadcast %cst_103 : f32 to vector<8x128xf32>
    %297 = arith.mulf %296, %295 : vector<8x128xf32>
    %cst_104 = arith.constant 5.000000e-01 : f32
    %298 = vector.broadcast %cst_104 : f32 to vector<8x128xf32>
    %299 = arith.addf %297, %298 : vector<8x128xf32>
    %300 = vector.extract_strided_slice %283 {offsets = [0, 256], sizes = [8, 128], strides = [1, 1]} : vector<8x512xf32> to vector<8x128xf32>
    %301 = math.tanh %300 : vector<8x128xf32>
    %302 = vector.extract_strided_slice %283 {offsets = [0, 384], sizes = [8, 128], strides = [1, 1]} : vector<8x512xf32> to vector<8x128xf32>
    %cst_105 = arith.constant 5.000000e-01 : f32
    %303 = vector.broadcast %cst_105 : f32 to vector<8x128xf32>
    %304 = arith.mulf %303, %302 : vector<8x128xf32>
    %305 = math.tanh %304 : vector<8x128xf32>
    %cst_106 = arith.constant 5.000000e-01 : f32
    %306 = vector.broadcast %cst_106 : f32 to vector<8x128xf32>
    %307 = arith.mulf %306, %305 : vector<8x128xf32>
    %cst_107 = arith.constant 5.000000e-01 : f32
    %308 = vector.broadcast %cst_107 : f32 to vector<8x128xf32>
    %309 = arith.addf %307, %308 : vector<8x128xf32>
    %310 = arith.mulf %299, %274 : vector<8x128xf32>
    %311 = arith.mulf %291, %301 : vector<8x128xf32>
    %312 = arith.addf %310, %311 : vector<8x128xf32>
    %313 = math.tanh %312 : vector<8x128xf32>
    %314 = arith.mulf %309, %313 : vector<8x128xf32>
    %c8_i32_108 = arith.constant 8 : i32
    %315 = arith.truncf %314 : vector<8x128xf32> to vector<8x128xbf16>
    %cst_109 = arith.constant dense<0.000000e+00> : vector<8x128xf32>
    %316 = tpu.matmul %315, %2, %cst_109 {dimension_numbers = #tpu.dot_dimension_numbers<[1], [0], [0], [1], [0, 0, 1, 1], [], []>} : vector<8x128xbf16>, vector<128x128xbf16>, vector<8x128xf32> -> vector<8x128xf32>
    %317 = vector.broadcast %4 : vector<1x128xf32> to vector<8x128xf32>
    %318 = arith.addf %316, %317 : vector<8x128xf32>
    %c0_110 = arith.constant 0 : index
    %c0_111 = arith.constant 0 : index
    %c0_112 = arith.constant 0 : index
    %319 = vector.load %arg6[%c0_110, %c0_111, %c0_112] : memref<1x8x128xf32, #tpu.memory_space<vmem>>, vector<1x8x128xf32>
    %320 = vector.shape_cast %319 : vector<1x8x128xf32> to vector<8x128xf32>
    %321 = vector.shape_cast %318 : vector<8x128xf32> to vector<1x8x128xf32>
    tpu.vector_store %arg6[%c0_110, %c0_111, %c0_112], %321 {strides = array<i32>} : memref<1x8x128xf32, #tpu.memory_space<vmem>>, vector<1x8x128xf32>,
    return
  }
  func.func @transform_0(%arg0: i32) -> (i32, i32) {
    %c0_i32 = arith.constant 0 : i32
    %c0_i32_0 = arith.constant 0 : i32
    %c0_i32_1 = arith.constant 0 : i32
    return %c0_i32, %c0_i32_0 : i32, i32
  }
  func.func @transform_1(%arg0: i32) -> (i32, i32) {
    %c0_i32 = arith.constant 0 : i32
    %c0_i32_0 = arith.constant 0 : i32
    %c0_i32_1 = arith.constant 0 : i32
    return %c0_i32, %c0_i32_0 : i32, i32
  }
  func.func @transform_2(%arg0: i32) -> (i32, i32) {
    %c0_i32 = arith.constant 0 : i32
    %c0_i32_0 = arith.constant 0 : i32
    %c0_i32_1 = arith.constant 0 : i32
    return %c0_i32, %c0_i32_0 : i32, i32
  }
  func.func @transform_3(%arg0: i32) -> (i32, i32) {
    %c0_i32 = arith.constant 0 : i32
    %c0_i32_0 = arith.constant 0 : i32
    %c0_i32_1 = arith.constant 0 : i32
    return %c0_i32, %c0_i32_0 : i32, i32
  }
  func.func @transform_4(%arg0: i32) -> (i32, i32) {
    %c0_i32 = arith.constant 0 : i32
    %c0_i32_0 = arith.constant 0 : i32
    %c0_i32_1 = arith.constant 0 : i32
    return %c0_i32, %c0_i32_0 : i32, i32
  }
  func.func @transform_5(%arg0: i32) -> (i32, i32, i32) {
    %c0_i32 = arith.constant 0 : i32
    %c0_i32_0 = arith.constant 0 : i32
    %c0_i32_1 = arith.constant 0 : i32
    %c0_i32_2 = arith.constant 0 : i32
    return %c0_i32, %c0_i32_0, %c0_i32_1 : i32, i32, i32
  }
}

</mosaic_0001>

<llo_original>
// kernel: forecaster_pallas.1
$region0: #{forecaster_pallas.1}
  #allocation0 [shape = 'u32[]', space=smem, size = 0x4, offset = 0x4, fixed_abs, tag = 'smem constant byte address 0x4 - core index']
  #allocation1 [shape = 'u32[72,128]{1,0:T(1,128)}', space=vmem, size = 0x9000, scoped, tag = 'internal scratch']
  #allocation2 [shape = 'f32[64,512]{1,0:T(8,128)}', space=vmem, size = 0x20000, scoped, tag = 'scratch operand']
  %s0 = inlined_call_operand.vmem [shape: bf16[64,128], index: 0, kind: input, shape index: {}]
  %s1 = inlined_call_operand.vmem [shape: bf16[256,512], index: 1, kind: input, shape index: {}]
  %s2 = inlined_call_operand.vmem [shape: f32[1,512], index: 2, kind: input, shape index: {}]
  %s3 = inlined_call_operand.vmem [shape: bf16[128,128], index: 3, kind: input, shape index: {}]
  %s4 = inlined_call_operand.vmem [shape: f32[1,128], index: 4, kind: input, shape index: {}]
  %s5 = inlined_call_operand.vmem [shape: f32[1,8,128], index: 5, kind: output, shape index: {}]
  %s6 = sld [smem:[#allocation0]]
  $region30: #{forecaster_pallas.1} parent=0
    _
  %s8 = ssub.s32 1, %s6
  %s9 = scalar_select 0, %s8, %s6
  // Predicated region
  $region2: #{forecaster_pallas.1} parent=0 // pred_check
    _
  $region3: #{forecaster_pallas.1} parent=0 // pred_check_branch
    %11 = sbr.rel (0) target = $region5
  $region4: #{forecaster_pallas.1} parent=0 // pred_region
    _
  $region5: #{forecaster_pallas.1} parent=0 // pred_fallthru
    _
  // Predicated region
  $region6: #{forecaster_pallas.1} parent=0 // pred_check
    _
  $region7: #{forecaster_pallas.1} parent=0 // pred_check_branch
    %13 = sbr.rel (0) target = $region9
  $region8: #{forecaster_pallas.1} parent=0 // pred_region
    _
  $region9: #{forecaster_pallas.1} parent=0 // pred_fallthru
    _
  // Predicated region
  $region10: #{forecaster_pallas.1} parent=0 // pred_check
    _
  $region11: #{forecaster_pallas.1} parent=0 // pred_check_branch
    %15 = sbr.rel (0) target = $region13
  $region12: #{forecaster_pallas.1} parent=0 // pred_region
    _
  $region13: #{forecaster_pallas.1} parent=0 // pred_fallthru
    _
  // Predicated region
  $region14: #{forecaster_pallas.1} parent=0 // pred_check
    _
  $region15: #{forecaster_pallas.1} parent=0 // pred_check_branch
    %17 = sbr.rel (0) target = $region17
  $region16: #{forecaster_pallas.1} parent=0 // pred_region
    _
  $region17: #{forecaster_pallas.1} parent=0 // pred_fallthru
    _
  // Predicated region
  $region18: #{forecaster_pallas.1} parent=0 // pred_check
    _
  $region19: #{forecaster_pallas.1} parent=0 // pred_check_branch
    %19 = sbr.rel (0) target = $region21
  $region20: #{forecaster_pallas.1} parent=0 // pred_region
    _
  $region21: #{forecaster_pallas.1} parent=0 // pred_fallthru
    _
  %v21 = vld [vmem:[%s1] sm:$0xff]
  %v22 = vld [vmem:[%s1 + $0x8] sm:$0xff]
  %v23 = vld [vmem:[%s1 + $0x10] sm:$0xff]
  %v24 = vld [vmem:[%s1 + $0x18] sm:$0xff]
  %v25 = vld [vmem:[%s1 + $0x20] sm:$0xff]
  %v26 = vld [vmem:[%s1 + $0x28] sm:$0xff]
  %v27 = vld [vmem:[%s1 + $0x30] sm:$0xff]
  %v28 = vld [vmem:[%s1 + $0x38] sm:$0xff]
  %v29 = vld [vmem:[%s1 + $0x40] sm:$0xff]
  %v30 = vld [vmem:[%s1 + $0x48] sm:$0xff]
  %v31 = vld [vmem:[%s1 + $0x50] sm:$0xff]
  %v32 = vld [vmem:[%s1 + $0x58] sm:$0xff]
  %v33 = vld [vmem:[%s1 + $0x60] sm:$0xff]
  %v34 = vld [vmem:[%s1 + $0x68] sm:$0xff]
  %v35 = vld [vmem:[%s1 + $0x70] sm:$0xff]
  %v36 = vld [vmem:[%s1 + $0x78] sm:$0xff]
  %v37 = vld [vmem:[%s1 + $0x80] sm:$0xff]
  %v38 = vld [vmem:[%s1 + $0x88] sm:$0xff]
  %v39 = vld [vmem:[%s1 + $0x90] sm:$0xff]
  %v40 = vld [vmem:[%s1 + $0x98] sm:$0xff]
  %v41 = vld [vmem:[%s1 + $0xa0] sm:$0xff]
  %v42 = vld [vmem:[%s1 + $0xa8] sm:$0xff]
  %v43 = vld [vmem:[%s1 + $0xb0] sm:$0xff]
  %v44 = vld [vmem:[%s1 + $0xb8] sm:$0xff]
  %v45 = vld [vmem:[%s1 + $0xc0] sm:$0xff]
  %v46 = vld [vmem:[%s1 + $0xc8] sm:$0xff]
  %v47 = vld [vmem:[%s1 + $0xd0] sm:$0xff]
  %v48 = vld [vmem:[%s1 + $0xd8] sm:$0xff]
  %v49 = vld [vmem:[%s1 + $0xe0] sm:$0xff]
  %v50 = vld [vmem:[%s1 + $0xe8] sm:$0xff]
  %v51 = vld [vmem:[%s1 + $0xf0] sm:$0xff]
  %v52 = vld [vmem:[%s1 + $0xf8] sm:$0xff]
  %v53 = vld [vmem:[%s1 + $0x100] sm:$0xff]
  %v54 = vld [vmem:[%s1 + $0x108] sm:$0xff]
  %v55 = vld [vmem:[%s1 + $0x110] sm:$0xff]
  %v56 = vld [vmem:[%s1 + $0x118] sm:$0xff]
  %v57 = vld [vmem:[%s1 + $0x120] sm:$0xff]
  %v58 = vld [vmem:[%s1 + $0x128] sm:$0xff]
  %v59 = vld [vmem:[%s1 + $0x130] sm:$0xff]
  %v60 = vld [vmem:[%s1 + $0x138] sm:$0xff]
  %v61 = vld [vmem:[%s1 + $0x140] sm:$0xff]
  %v62 = vld [vmem:[%s1 + $0x148] sm:$0xff]
  %v63 = vld [vmem:[%s1 + $0x150] sm:$0xff]
  %v64 = vld [vmem:[%s1 + $0x158] sm:$0xff]
  %v65 = vld [vmem:[%s1 + $0x160] sm:$0xff]
  %v66 = vld [vmem:[%s1 + $0x168] sm:$0xff]
  %v67 = vld [vmem:[%s1 + $0x170] sm:$0xff]
  %v68 = vld [vmem:[%s1 + $0x178] sm:$0xff]
  %v69 = vld [vmem:[%s1 + $0x180] sm:$0xff]
  %v70 = vld [vmem:[%s1 + $0x188] sm:$0xff]
  %v71 = vld [vmem:[%s1 + $0x190] sm:$0xff]
  %v72 = vld [vmem:[%s1 + $0x198] sm:$0xff]
  %v73 = vld [vmem:[%s1 + $0x1a0] sm:$0xff]
  %v74 = vld [vmem:[%s1 + $0x1a8] sm:$0xff]
  %v75 = vld [vmem:[%s1 + $0x1b0] sm:$0xff]
  %v76 = vld [vmem:[%s1 + $0x1b8] sm:$0xff]
  %v77 = vld [vmem:[%s1 + $0x1c0] sm:$0xff]
  %v78 = vld [vmem:[%s1 + $0x1c8] sm:$0xff]
  %v79 = vld [vmem:[%s1 + $0x1d0] sm:$0xff]
  %v80 = vld [vmem:[%s1 + $0x1d8] sm:$0xff]
  %v81 = vld [vmem:[%s1 + $0x1e0] sm:$0xff]
  %v82 = vld [vmem:[%s1 + $0x1e8] sm:$0xff]
  %v83 = vld [vmem:[%s1 + $0x1f0] sm:$0xff]
  %v84 = vld [vmem:[%s1 + $0x1f8] sm:$0xff]
  %v85 = vld [vmem:[%s3] sm:$0xf]
  %v86 = vld [vmem:[%s3 + $0x4] sm:$0xf]
  %v87 = vld [vmem:[%s3 + $0x8] sm:$0xf]
  %v88 = vld [vmem:[%s3 + $0xc] sm:$0xf]
  %v89 = vld [vmem:[%s3 + $0x10] sm:$0xf]
  %v90 = vld [vmem:[%s3 + $0x14] sm:$0xf]
  %v91 = vld [vmem:[%s3 + $0x18] sm:$0xf]
  %v92 = vld [vmem:[%s3 + $0x1c] sm:$0xf]
  %v93 = vld [vmem:[%s3 + $0x20] sm:$0xf]
  %v94 = vld [vmem:[%s3 + $0x24] sm:$0xf]
  %v95 = vld [vmem:[%s3 + $0x28] sm:$0xf]
  %v96 = vld [vmem:[%s3 + $0x2c] sm:$0xf]
  %v97 = vld [vmem:[%s3 + $0x30] sm:$0xf]
  %v98 = vld [vmem:[%s3 + $0x34] sm:$0xf]
  %v99 = vld [vmem:[%s3 + $0x38] sm:$0xf]
  %v100 = vld [vmem:[%s3 + $0x3c] sm:$0xf]
  %v101 = vld [vmem:[%s2] sm:$0xf]
  %v102 = vld [vmem:[%s4] sm:$0x1]
  %v103 = vld [vmem:[%s0] sm:$0xf]
  %v104 = vld [vmem:[%s0 + $0x4] sm:$0xf]
  %v105 = vld [vmem:[%s0 + $0x8] sm:$0xf]
  %v106 = vld [vmem:[%s0 + $0xc] sm:$0xf]
  %v107 = vld [vmem:[%s0 + $0x10] sm:$0xf]
  %v108 = vld [vmem:[%s0 + $0x14] sm:$0xf]
  %v109 = vld [vmem:[%s0 + $0x18] sm:$0xf]
  %v110 = vld [vmem:[%s0 + $0x1c] sm:$0xf]
  %v112 = vperm.slane %v101, 0
  %v113 = vperm.slane %v101, 1
  %v114 = vperm.slane %v101, 2
  %v115 = vperm.slane %v101, 3
  %v128 = vunpack.c.l.b16 %v103
  %v129 = vunpack.c.l.b16 %v104
  %v130 = vunpack.c.l.b16 %v105
  %v131 = vunpack.c.l.b16 %v106
  %v132 = vunpack.c.l.b16 %v107
  %v133 = vunpack.c.l.b16 %v108
  %v134 = vunpack.c.l.b16 %v109
  %v135 = vunpack.c.l.b16 %v110
  %v136 = vpack.c.b16 %v129, %v128
  %v137 = vpack.c.b16 %v131, %v130
  %v138 = vpack.c.b16 %v133, %v132
  %v139 = vpack.c.b16 %v135, %v134
  %v176 = vunpack.c.l.b16 %v21
  %v177 = vunpack.c.h.b16 %v21
  %v178 = vunpack.c.l.b16 %v22
  %v179 = vunpack.c.h.b16 %v22
  %v180 = vunpack.c.l.b16 %v23
  %v181 = vunpack.c.h.b16 %v23
  %v182 = vunpack.c.l.b16 %v24
  %v183 = vunpack.c.h.b16 %v24
  %v184 = vunpack.c.l.b16 %v25
  %v185 = vunpack.c.h.b16 %v25
  %v186 = vunpack.c.l.b16 %v26
  %v187 = vunpack.c.h.b16 %v26
  %v188 = vunpack.c.l.b16 %v27
  %v189 = vunpack.c.h.b16 %v27
  %v190 = vunpack.c.l.b16 %v28
  %v191 = vunpack.c.h.b16 %v28
  %v192 = vunpack.c.l.b16 %v29
  %v193 = vunpack.c.h.b16 %v29
  %v194 = vunpack.c.l.b16 %v30
  %v195 = vunpack.c.h.b16 %v30
  %v196 = vunpack.c.l.b16 %v31
  %v197 = vunpack.c.h.b16 %v31
  %v198 = vunpack.c.l.b16 %v32
  %v199 = vunpack.c.h.b16 %v32
  %v200 = vunpack.c.l.b16 %v33
  %v201 = vunpack.c.h.b16 %v33
  %v202 = vunpack.c.l.b16 %v34
  %v203 = vunpack.c.h.b16 %v34
  %v204 = vunpack.c.l.b16 %v35
  %v205 = vunpack.c.h.b16 %v35
  %v206 = vunpack.c.l.b16 %v36
  %v207 = vunpack.c.h.b16 %v36
  %v208 = vunpack.c.l.b16 %v37
  %v209 = vunpack.c.h.b16 %v37
  %v210 = vunpack.c.l.b16 %v38
  %v211 = vunpack.c.h.b16 %v38
  %v212 = vunpack.c.l.b16 %v39
  %v213 = vunpack.c.h.b16 %v39
  %v214 = vunpack.c.l.b16 %v40
  %v215 = vunpack.c.h.b16 %v40
  %v216 = vunpack.c.l.b16 %v41
  %v217 = vunpack.c.h.b16 %v41
  %v218 = vunpack.c.l.b16 %v42
  %v219 = vunpack.c.h.b16 %v42
  %v220 = vunpack.c.l.b16 %v43
  %v221 = vunpack.c.h.b16 %v43
  %v222 = vunpack.c.l.b16 %v44
  %v223 = vunpack.c.h.b16 %v44
  %v224 = vunpack.c.l.b16 %v45
  %v225 = vunpack.c.h.b16 %v45
  %v226 = vunpack.c.l.b16 %v46
  %v227 = vunpack.c.h.b16 %v46
  %v228 = vunpack.c.l.b16 %v47
  %v229 = vunpack.c.h.b16 %v47
  %v230 = vunpack.c.l.b16 %v48
  %v231 = vunpack.c.h.b16 %v48
  %v232 = vunpack.c.l.b16 %v49
  %v233 = vunpack.c.h.b16 %v49
  %v234 = vunpack.c.l.b16 %v50
  %v235 = vunpack.c.h.b16 %v50
  %v236 = vunpack.c.l.b16 %v51
  %v237 = vunpack.c.h.b16 %v51
  %v238 = vunpack.c.l.b16 %v52
  %v239 = vunpack.c.h.b16 %v52
  %v240 = vpack.c.b16 %v180, %v176
  %v241 = vpack.c.b16 %v181, %v177
  %v242 = vpack.c.b16 %v182, %v178
  %v243 = vpack.c.b16 %v183, %v179
  %v244 = vpack.c.b16 %v188, %v184
  %v245 = vpack.c.b16 %v189, %v185
  %v246 = vpack.c.b16 %v190, %v186
  %v247 = vpack.c.b16 %v191, %v187
  %v248 = vpack.c.b16 %v196, %v192
  %v249 = vpack.c.b16 %v197, %v193
  %v250 = vpack.c.b16 %v198, %v194
  %v251 = vpack.c.b16 %v199, %v195
  %v252 = vpack.c.b16 %v204, %v200
  %v253 = vpack.c.b16 %v205, %v201
  %v254 = vpack.c.b16 %v206, %v202
  %v255 = vpack.c.b16 %v207, %v203
  %v256 = vpack.c.b16 %v212, %v208
  %v257 = vpack.c.b16 %v213, %v209
  %v258 = vpack.c.b16 %v214, %v210
  %v259 = vpack.c.b16 %v215, %v211
  %v260 = vpack.c.b16 %v220, %v216
  %v261 = vpack.c.b16 %v221, %v217
  %v262 = vpack.c.b16 %v222, %v218
  %v263 = vpack.c.b16 %v223, %v219
  %v264 = vpack.c.b16 %v228, %v224
  %v265 = vpack.c.b16 %v229, %v225
  %v266 = vpack.c.b16 %v230, %v226
  %v267 = vpack.c.b16 %v231, %v227
  %v268 = vpack.c.b16 %v236, %v232
  %v269 = vpack.c.b16 %v237, %v233
  %v270 = vpack.c.b16 %v238, %v234
  %v271 = vpack.c.b16 %v239, %v235
  %304 = vmatpush.bf16.msra.mxu0 %v268
  %305 = vmatpush.bf16.msra.mxu0 %v264
  %306 = vmatpush.bf16.msra.mxu0 %v260
  %307 = vmatpush.bf16.msra.mxu0 %v256
  %308 = vmatpush.bf16.msra.mxu0 %v252
  %309 = vmatpush.bf16.msra.mxu0 %v248
  %310 = vmatpush.bf16.msra.mxu0 %v244
  %311 = vmatpush.bf16.msra.mxu0 %v240
  %312 = vmatmul.bf16.gmra.mxu0 %v136
  %v313 = vpop.f32.mrf.mxu0
  %v314 = vadd.f32 %v112, %v313
  %v315 = vpop.f32.mrf.mxu0
  %v316 = vadd.f32 %v112, %v315
  %317 = vmatmul.bf16.gmra.mxu0 %v137
  %v318 = vpop.f32.mrf.mxu0
  %v319 = vadd.f32 %v112, %v318
  %v320 = vpop.f32.mrf.mxu0
  %v321 = vadd.f32 %v112, %v320
  %322 = vmatmul.bf16.gmra.mxu0 %v138
  %v323 = vpop.f32.mrf.mxu0
  %v324 = vadd.f32 %v112, %v323
  %v325 = vpop.f32.mrf.mxu0
  %v326 = vadd.f32 %v112, %v325
  %327 = vmatmul.bf16.gmra.mxu0 %v139
  %v328 = vpop.f32.mrf.mxu0
  %v329 = vadd.f32 %v112, %v328
  %v330 = vpop.f32.mrf.mxu0
  %v331 = vadd.f32 %v112, %v330
  %332 = vdwg.mxu0
  %333 = vmatpush.bf16.msra.mxu0 %v269
  %334 = vmatpush.bf16.msra.mxu0 %v265
  %335 = vmatpush.bf16.msra.mxu0 %v261
  %336 = vmatpush.bf16.msra.mxu0 %v257
  %337 = vmatpush.bf16.msra.mxu0 %v253
  %338 = vmatpush.bf16.msra.mxu0 %v249
  %339 = vmatpush.bf16.msra.mxu0 %v245
  %340 = vmatpush.bf16.msra.mxu0 %v241
  %341 = vmatmul.bf16.gmra.mxu0 %v136
  %v342 = vpop.f32.mrf.mxu0
  %v343 = vadd.f32 %v113, %v342
  %v344 = vpop.f32.mrf.mxu0
  %v345 = vadd.f32 %v113, %v344
  %346 = vmatmul.bf16.gmra.mxu0 %v137
  %v347 = vpop.f32.mrf.mxu0
  %v348 = vadd.f32 %v113, %v347
  %v349 = vpop.f32.mrf.mxu0
  %v350 = vadd.f32 %v113, %v349
  %351 = vmatmul.bf16.gmra.mxu0 %v138
  %v352 = vpop.f32.mrf.mxu0
  %v353 = vadd.f32 %v113, %v352
  %v354 = vpop.f32.mrf.mxu0
  %v355 = vadd.f32 %v113, %v354
  %356 = vmatmul.bf16.gmra.mxu0 %v139
  %v357 = vpop.f32.mrf.mxu0
  %v358 = vadd.f32 %v113, %v357
  %v359 = vpop.f32.mrf.mxu0
  %v360 = vadd.f32 %v113, %v359
  %361 = vdwg.mxu0
  %362 = vmatpush.bf16.msra.mxu0 %v270
  %363 = vmatpush.bf16.msra.mxu0 %v266
  %364 = vmatpush.bf16.msra.mxu0 %v262
  %365 = vmatpush.bf16.msra.mxu0 %v258
  %366 = vmatpush.bf16.msra.mxu0 %v254
  %367 = vmatpush.bf16.msra.mxu0 %v250
  %368 = vmatpush.bf16.msra.mxu0 %v246
  %369 = vmatpush.bf16.msra.mxu0 %v242
  %370 = vmatmul.bf16.gmra.mxu0 %v136
  %v371 = vpop.f32.mrf.mxu0
  %v372 = vadd.f32 %v114, %v371
  %v373 = vpop.f32.mrf.mxu0
  %v374 = vadd.f32 %v114, %v373
  %375 = vmatmul.bf16.gmra.mxu0 %v137
  %v376 = vpop.f32.mrf.mxu0
  %v377 = vadd.f32 %v114, %v376
  %v378 = vpop.f32.mrf.mxu0
  %v379 = vadd.f32 %v114, %v378
  %380 = vmatmul.bf16.gmra.mxu0 %v138
  %v381 = vpop.f32.mrf.mxu0
  %v382 = vadd.f32 %v114, %v381
  %v383 = vpop.f32.mrf.mxu0
  %v384 = vadd.f32 %v114, %v383
  %385 = vmatmul.bf16.gmra.mxu0 %v139
  %v386 = vpop.f32.mrf.mxu0
  %v387 = vadd.f32 %v114, %v386
  %v388 = vpop.f32.mrf.mxu0
  %v389 = vadd.f32 %v114, %v388
  %390 = vdwg.mxu0
  %391 = vmatpush.bf16.msra.mxu0 %v271
  %392 = vmatpush.bf16.msra.mxu0 %v267
  %393 = vmatpush.bf16.msra.mxu0 %v263
  %394 = vmatpush.bf16.msra.mxu0 %v259
  %395 = vmatpush.bf16.msra.mxu0 %v255
  %396 = vmatpush.bf16.msra.mxu0 %v251
  %397 = vmatpush.bf16.msra.mxu0 %v247
  %398 = vmatpush.bf16.msra.mxu0 %v243
  %399 = vmatmul.bf16.gmra.mxu0 %v136
  %v400 = vpop.f32.mrf.mxu0
  %v401 = vadd.f32 %v115, %v400
  %v402 = vpop.f32.mrf.mxu0
  %v403 = vadd.f32 %v115, %v402
  %404 = vmatmul.bf16.gmra.mxu0 %v137
  %v405 = vpop.f32.mrf.mxu0
  %v406 = vadd.f32 %v115, %v405
  %v407 = vpop.f32.mrf.mxu0
  %v408 = vadd.f32 %v115, %v407
  %409 = vmatmul.bf16.gmra.mxu0 %v138
  %v410 = vpop.f32.mrf.mxu0
  %v411 = vadd.f32 %v115, %v410
  %v412 = vpop.f32.mrf.mxu0
  %v413 = vadd.f32 %v115, %v412
  %414 = vmatmul.bf16.gmra.mxu0 %v139
  %v415 = vpop.f32.mrf.mxu0
  %v416 = vadd.f32 %v115, %v415
  %v417 = vpop.f32.mrf.mxu0
  %v418 = vadd.f32 %v115, %v417
  %419 = vdwg.mxu0
  %420 = vst [vmem:[#allocation2] sm:$0xff] %v314
  %421 = vst [vmem:[#allocation2 + $0x8] sm:$0xff] %v343
  %422 = vst [vmem:[#allocation2 + $0x10] sm:$0xff] %v372
  %423 = vst [vmem:[#allocation2 + $0x18] sm:$0xff] %v401
  %424 = vst [vmem:[#allocation2 + $0x20] sm:$0xff] %v316
  %425 = vst [vmem:[#allocation2 + $0x28] sm:$0xff] %v345
  %426 = vst [vmem:[#allocation2 + $0x30] sm:$0xff] %v374
  %427 = vst [vmem:[#allocation2 + $0x38] sm:$0xff] %v403
  %428 = vst [vmem:[#allocation2 + $0x40] sm:$0xff] %v319
  %429 = vst [vmem:[#allocation2 + $0x48] sm:$0xff] %v348
  %430 = vst [vmem:[#allocation2 + $0x50] sm:$0xff] %v377
  %431 = vst [vmem:[#allocation2 + $0x58] sm:$0xff] %v406
  %432 = vst [vmem:[#allocation2 + $0x60] sm:$0xff] %v321
  %433 = vst [vmem:[#allocation2 + $0x68] sm:$0xff] %v350
  %434 = vst [vmem:[#allocation2 + $0x70] sm:$0xff] %v379
  %435 = vst [vmem:[#allocation2 + $0x78] sm:$0xff] %v408
  %436 = vst [vmem:[#allocation2 + $0x80] sm:$0xff] %v324
  %437 = vst [vmem:[#allocation2 + $0x88] sm:$0xff] %v353
  %438 = vst [vmem:[#allocation2 + $0x90] sm:$0xff] %v382
  %439 = vst [vmem:[#allocation2 + $0x98] sm:$0xff] %v411
  %440 = vst [vmem:[#allocation2 + $0xa0] sm:$0xff] %v326
  %441 = vst [vmem:[#allocation2 + $0xa8] sm:$0xff] %v355
  %442 = vst [vmem:[#allocation2 + $0xb0] sm:$0xff] %v384
  %443 = vst [vmem:[#allocation2 + $0xb8] sm:$0xff] %v413
  %444 = vst [vmem:[#allocation2 + $0xc0] sm:$0xff] %v329
  %445 = vst [vmem:[#allocation2 + $0xc8] sm:$0xff] %v358
  %446 = vst [vmem:[#allocation2 + $0xd0] sm:$0xff] %v387
  %447 = vst [vmem:[#allocation2 + $0xd8] sm:$0xff] %v416
  %448 = vst [vmem:[#allocation2 + $0xe0] sm:$0xff] %v331
  %449 = vst [vmem:[#allocation2 + $0xe8] sm:$0xff] %v360
  %450 = vst [vmem:[#allocation2 + $0xf0] sm:$0xff] %v389
  %451 = vst [vmem:[#allocation2 + $0xf8] sm:$0xff] %v418
  %s452 = smul.u32 0, 4
  %s453 = smul.addr %s452, 8
  %s454 = scalar_lea.vmem [#allocation2], %s453
  %v455 = vld [vmem:[%s454] sm:$0xff]
  %v456 = vld [vmem:[%s454 + $0x8] sm:$0xff]
  %v457 = vld [vmem:[%s454 + $0x10] sm:$0xff]
  %v458 = vld [vmem:[%s454 + $0x18] sm:$0xff]
  %v491 = vunpack.c.l.b16 %v53
  %v492 = vunpack.c.h.b16 %v53
  %v493 = vunpack.c.l.b16 %v54
  %v494 = vunpack.c.h.b16 %v54
  %v495 = vunpack.c.l.b16 %v55
  %v496 = vunpack.c.h.b16 %v55
  %v497 = vunpack.c.l.b16 %v56
  %v498 = vunpack.c.h.b16 %v56
  %v499 = vunpack.c.l.b16 %v57
  %v500 = vunpack.c.h.b16 %v57
  %v501 = vunpack.c.l.b16 %v58
  %v502 = vunpack.c.h.b16 %v58
  %v503 = vunpack.c.l.b16 %v59
  %v504 = vunpack.c.h.b16 %v59
  %v505 = vunpack.c.l.b16 %v60
  %v506 = vunpack.c.h.b16 %v60
  %v507 = vunpack.c.l.b16 %v61
  %v508 = vunpack.c.h.b16 %v61
  %v509 = vunpack.c.l.b16 %v62
  %v510 = vunpack.c.h.b16 %v62
  %v511 = vunpack.c.l.b16 %v63
  %v512 = vunpack.c.h.b16 %v63
  %v513 = vunpack.c.l.b16 %v64
  %v514 = vunpack.c.h.b16 %v64
  %v515 = vunpack.c.l.b16 %v65
  %v516 = vunpack.c.h.b16 %v65
  %v517 = vunpack.c.l.b16 %v66
  %v518 = vunpack.c.h.b16 %v66
  %v519 = vunpack.c.l.b16 %v67
  %v520 = vunpack.c.h.b16 %v67
  %v521 = vunpack.c.l.b16 %v68
  %v522 = vunpack.c.h.b16 %v68
  %v523 = vunpack.c.l.b16 %v69
  %v524 = vunpack.c.h.b16 %v69
  %v525 = vunpack.c.l.b16 %v70
  %v526 = vunpack.c.h.b16 %v70
  %v527 = vunpack.c.l.b16 %v71
  %v528 = vunpack.c.h.b16 %v71
  %v529 = vunpack.c.l.b16 %v72
  %v530 = vunpack.c.h.b16 %v72
  %v531 = vunpack.c.l.b16 %v73
  %v532 = vunpack.c.h.b16 %v73
  %v533 = vunpack.c.l.b16 %v74
  %v534 = vunpack.c.h.b16 %v74
  %v535 = vunpack.c.l.b16 %v75
  %v536 = vunpack.c.h.b16 %v75
  %v537 = vunpack.c.l.b16 %v76
  %v538 = vunpack.c.h.b16 %v76
  %v539 = vunpack.c.l.b16 %v77
  %v540 = vunpack.c.h.b16 %v77
  %v541 = vunpack.c.l.b16 %v78
  %v542 = vunpack.c.h.b16 %v78
  %v543 = vunpack.c.l.b16 %v79
  %v544 = vunpack.c.h.b16 %v79
  %v545 = vunpack.c.l.b16 %v80
  %v546 = vunpack.c.h.b16 %v80
  %v547 = vunpack.c.l.b16 %v81
  %v548 = vunpack.c.h.b16 %v81
  %v549 = vunpack.c.l.b16 %v82
  %v550 = vunpack.c.h.b16 %v82
  %v551 = vunpack.c.l.b16 %v83
  %v552 = vunpack.c.h.b16 %v83
  %v553 = vunpack.c.l.b16 %v84
  %v554 = vunpack.c.h.b16 %v84
  %v555 = vpack.c.b16 %v495, %v491
  %v556 = vpack.c.b16 %v496, %v492
  %v557 = vpack.c.b16 %v497, %v493
  %v558 = vpack.c.b16 %v498, %v494
  %v559 = vpack.c.b16 %v503, %v499
  %v560 = vpack.c.b16 %v504, %v500
  %v561 = vpack.c.b16 %v505, %v501
  %v562 = vpack.c.b16 %v506, %v502
  %v563 = vpack.c.b16 %v511, %v507
  %v564 = vpack.c.b16 %v512, %v508
  %v565 = vpack.c.b16 %v513, %v509
  %v566 = vpack.c.b16 %v514, %v510
  %v567 = vpack.c.b16 %v519, %v515
  %v568 = vpack.c.b16 %v520, %v516
  %v569 = vpack.c.b16 %v521, %v517
  %v570 = vpack.c.b16 %v522, %v518
  %v571 = vpack.c.b16 %v527, %v523
  %v572 = vpack.c.b16 %v528, %v524
  %v573 = vpack.c.b16 %v529, %v525
  %v574 = vpack.c.b16 %v530, %v526
  %v575 = vpack.c.b16 %v535, %v531
  %v576 = vpack.c.b16 %v536, %v532
  %v577 = vpack.c.b16 %v537, %v533
  %v578 = vpack.c.b16 %v538, %v534
  %v579 = vpack.c.b16 %v543, %v539
  %v580 = vpack.c.b16 %v544, %v540
  %v581 = vpack.c.b16 %v545, %v541
  %v582 = vpack.c.b16 %v546, %v542
  %v583 = vpack.c.b16 %v551, %v547
  %v584 = vpack.c.b16 %v552, %v548
  %v585 = vpack.c.b16 %v553, %v549
  %v586 = vpack.c.b16 %v554, %v550
  %619 = vmatpush.bf16.msra.mxu0 %v583
  %620 = vmatpush.bf16.msra.mxu0 %v579
  %621 = vmatpush.bf16.msra.mxu0 %v575
  %622 = vmatpush.bf16.msra.mxu0 %v571
  %623 = vmatpush.bf16.msra.mxu0 %v567
  %624 = vmatpush.bf16.msra.mxu0 %v563
  %625 = vmatpush.bf16.msra.mxu0 %v559
  %626 = vmatpush.bf16.msra.mxu0 %v555
  %627 = vmatmul.bf16.gmra.mxu0 0
  %v628 = vpop.f32.mrf.mxu0
  %v629 = vadd.f32 0.0, %v628
  %v630 = vpop.f32.mrf.mxu0
  %631 = vdwg.mxu0
  %632 = vmatpush.bf16.msra.mxu0 %v584
  %633 = vmatpush.bf16.msra.mxu0 %v580
  %634 = vmatpush.bf16.msra.mxu0 %v576
  %635 = vmatpush.bf16.msra.mxu0 %v572
  %636 = vmatpush.bf16.msra.mxu0 %v568
  %637 = vmatpush.bf16.msra.mxu0 %v564
  %638 = vmatpush.bf16.msra.mxu0 %v560
  %639 = vmatpush.bf16.msra.mxu0 %v556
  %640 = vmatmul.bf16.gmra.mxu0 0
  %v641 = vpop.f32.mrf.mxu0
  %v642 = vadd.f32 0.0, %v641
  %v643 = vpop.f32.mrf.mxu0
  %644 = vdwg.mxu0
  %645 = vmatpush.bf16.msra.mxu0 %v585
  %646 = vmatpush.bf16.msra.mxu0 %v581
  %647 = vmatpush.bf16.msra.mxu0 %v577
  %648 = vmatpush.bf16.msra.mxu0 %v573
  %649 = vmatpush.bf16.msra.mxu0 %v569
  %650 = vmatpush.bf16.msra.mxu0 %v565
  %651 = vmatpush.bf16.msra.mxu0 %v561
  %652 = vmatpush.bf16.msra.mxu0 %v557
  %653 = vmatmul.bf16.gmra.mxu0 0
  %v654 = vpop.f32.mrf.mxu0
  %v655 = vadd.f32 0.0, %v654
  %v656 = vpop.f32.mrf.mxu0
  %657 = vdwg.mxu0
  %658 = vmatpush.bf16.msra.mxu0 %v586
  %659 = vmatpush.bf16.msra.mxu0 %v582
  %660 = vmatpush.bf16.msra.mxu0 %v578
  %661 = vmatpush.bf16.msra.mxu0 %v574
  %662 = vmatpush.bf16.msra.mxu0 %v570
  %663 = vmatpush.bf16.msra.mxu0 %v566
  %664 = vmatpush.bf16.msra.mxu0 %v562
  %665 = vmatpush.bf16.msra.mxu0 %v558
  %666 = vmatmul.bf16.gmra.mxu0 0
  %v667 = vpop.f32.mrf.mxu0
  %v668 = vadd.f32 0.0, %v667
  %v669 = vpop.f32.mrf.mxu0
  %670 = vdwg.mxu0
  %v671 = vadd.f32 %v455, %v629
  %v672 = vadd.f32 %v456, %v642
  %v673 = vadd.f32 %v457, %v655
  %v674 = vadd.f32 %v458, %v668
  %v675 = vmul.f32 %v671, 0.5
  %v676 = vtanh.pop %v675
  %v677 = vmul.f32 %v676, 0.5
  %v678 = vadd.f32 %v677, 0.5
  %v679 = vmul.f32 %v672, 0.5
  %v680 = vtanh.pop %v679
  %v681 = vmul.f32 %v680, 0.5
  %v682 = vadd.f32 %v681, 0.5
  %v683 = vtanh.pop %v673
  %v684 = vmul.f32 %v674, 0.5
  %v685 = vtanh.pop %v684
  %v686 = vmul.f32 %v685, 0.5
  %v687 = vadd.f32 %v686, 0.5
  %v688 = vmul.f32 %v682, 0.0
  %v689 = vmul.f32 %v678, %v683
  %v690 = vadd.f32 %v688, %v689
  %v691 = vtanh.pop %v690
  %v692 = vmul.f32 %v687, %v691
  %s693 = smul.u32 1, 4
  %s694 = smul.addr %s693, 8
  %s695 = scalar_lea.vmem [#allocation2], %s694
  %v696 = vld [vmem:[%s695] sm:$0xff]
  %v697 = vld [vmem:[%s695 + $0x8] sm:$0xff]
  %v698 = vld [vmem:[%s695 + $0x10] sm:$0xff]
  %v699 = vld [vmem:[%s695 + $0x18] sm:$0xff]
  %v700 = vpack.c.bf16 %v692, %v692
  %701 = vmatpush.bf16.msra.mxu0 %v583
  %702 = vmatpush.bf16.msra.mxu0 %v579
  %703 = vmatpush.bf16.msra.mxu0 %v575
  %704 = vmatpush.bf16.msra.mxu0 %v571
  %705 = vmatpush.bf16.msra.mxu0 %v567
  %706 = vmatpush.bf16.msra.mxu0 %v563
  %707 = vmatpush.bf16.msra.mxu0 %v559
  %708 = vmatpush.bf16.msra.mxu0 %v555
  %709 = vmatmul.bf16.gmra.mxu0 %v700
  %v710 = vpop.f32.mrf.mxu0
  %v711 = vadd.f32 0.0, %v710
  %v712 = vpop.f32.mrf.mxu0
  %713 = vdwg.mxu0
  %714 = vmatpush.bf16.msra.mxu0 %v584
  %715 = vmatpush.bf16.msra.mxu0 %v580
  %716 = vmatpush.bf16.msra.mxu0 %v576
  %717 = vmatpush.bf16.msra.mxu0 %v572
  %718 = vmatpush.bf16.msra.mxu0 %v568
  %719 = vmatpush.bf16.msra.mxu0 %v564
  %720 = vmatpush.bf16.msra.mxu0 %v560
  %721 = vmatpush.bf16.msra.mxu0 %v556
  %722 = vmatmul.bf16.gmra.mxu0 %v700
  %v723 = vpop.f32.mrf.mxu0
  %v724 = vadd.f32 0.0, %v723
  %v725 = vpop.f32.mrf.mxu0
  %726 = vdwg.mxu0
  %727 = vmatpush.bf16.msra.mxu0 %v585
  %728 = vmatpush.bf16.msra.mxu0 %v581
  %729 = vmatpush.bf16.msra.mxu0 %v577
  %730 = vmatpush.bf16.msra.mxu0 %v573
  %731 = vmatpush.bf16.msra.mxu0 %v569
  %732 = vmatpush.bf16.msra.mxu0 %v565
  %733 = vmatpush.bf16.msra.mxu0 %v561
  %734 = vmatpush.bf16.msra.mxu0 %v557
  %735 = vmatmul.bf16.gmra.mxu0 %v700
  %v736 = vpop.f32.mrf.mxu0
  %v737 = vadd.f32 0.0, %v736
  %v738 = vpop.f32.mrf.mxu0
  %739 = vdwg.mxu0
  %740 = vmatpush.bf16.msra.mxu0 %v586
  %741 = vmatpush.bf16.msra.mxu0 %v582
  %742 = vmatpush.bf16.msra.mxu0 %v578
  %743 = vmatpush.bf16.msra.mxu0 %v574
  %744 = vmatpush.bf16.msra.mxu0 %v570
  %745 = vmatpush.bf16.msra.mxu0 %v566
  %746 = vmatpush.bf16.msra.mxu0 %v562
  %747 = vmatpush.bf16.msra.mxu0 %v558
  %748 = vmatmul.bf16.gmra.mxu0 %v700
  %v749 = vpop.f32.mrf.mxu0
  %v750 = vadd.f32 0.0, %v749
  %v751 = vpop.f32.mrf.mxu0
  %752 = vdwg.mxu0
  %v753 = vadd.f32 %v696, %v711
  %v754 = vadd.f32 %v697, %v724
  %v755 = vadd.f32 %v698, %v737
  %v756 = vadd.f32 %v699, %v750
  %v757 = vmul.f32 %v753, 0.5
  %v758 = vtanh.pop %v757
  %v759 = vmul.f32 %v758, 0.5
  %v760 = vadd.f32 %v759, 0.5
  %v761 = vmul.f32 %v754, 0.5
  %v762 = vtanh.pop %v761
  %v763 = vmul.f32 %v762, 0.5
  %v764 = vadd.f32 %v763, 0.5
  %v765 = vtanh.pop %v755
  %v766 = vmul.f32 %v756, 0.5
  %v767 = vtanh.pop %v766
  %v768 = vmul.f32 %v767, 0.5
  %v769 = vadd.f32 %v768, 0.5
  %v770 = vmul.f32 %v764, %v690
  %v771 = vmul.f32 %v760, %v765
  %v772 = vadd.f32 %v770, %v771
  %v773 = vtanh.pop %v772
  %v774 = vmul.f32 %v769, %v773
  %s775 = smul.u32 2, 4
  %s776 = smul.addr %s775, 8
  %s777 = scalar_lea.vmem [#allocation2], %s776
  %v778 = vld [vmem:[%s777] sm:$0xff]
  %v779 = vld [vmem:[%s777 + $0x8] sm:$0xff]
  %v780 = vld [vmem:[%s777 + $0x10] sm:$0xff]
  %v781 = vld [vmem:[%s777 + $0x18] sm:$0xff]
  %v782 = vpack.c.bf16 %v774, %v774
  %783 = vmatpush.bf16.msra.mxu0 %v583
  %784 = vmatpush.bf16.msra.mxu0 %v579
  %785 = vmatpush.bf16.msra.mxu0 %v575
  %786 = vmatpush.bf16.msra.mxu0 %v571
  %787 = vmatpush.bf16.msra.mxu0 %v567
  %788 = vmatpush.bf16.msra.mxu0 %v563
  %789 = vmatpush.bf16.msra.mxu0 %v559
  %790 = vmatpush.bf16.msra.mxu0 %v555
  %791 = vmatmul.bf16.gmra.mxu0 %v782
  %v792 = vpop.f32.mrf.mxu0
  %v793 = vadd.f32 0.0, %v792
  %v794 = vpop.f32.mrf.mxu0
  %795 = vdwg.mxu0
  %796 = vmatpush.bf16.msra.mxu0 %v584
  %797 = vmatpush.bf16.msra.mxu0 %v580
  %798 = vmatpush.bf16.msra.mxu0 %v576
  %799 = vmatpush.bf16.msra.mxu0 %v572
  %800 = vmatpush.bf16.msra.mxu0 %v568
  %801 = vmatpush.bf16.msra.mxu0 %v564
  %802 = vmatpush.bf16.msra.mxu0 %v560
  %803 = vmatpush.bf16.msra.mxu0 %v556
  %804 = vmatmul.bf16.gmra.mxu0 %v782
  %v805 = vpop.f32.mrf.mxu0
  %v806 = vadd.f32 0.0, %v805
  %v807 = vpop.f32.mrf.mxu0
  %808 = vdwg.mxu0
  %809 = vmatpush.bf16.msra.mxu0 %v585
  %810 = vmatpush.bf16.msra.mxu0 %v581
  %811 = vmatpush.bf16.msra.mxu0 %v577
  %812 = vmatpush.bf16.msra.mxu0 %v573
  %813 = vmatpush.bf16.msra.mxu0 %v569
  %814 = vmatpush.bf16.msra.mxu0 %v565
  %815 = vmatpush.bf16.msra.mxu0 %v561
  %816 = vmatpush.bf16.msra.mxu0 %v557
  %817 = vmatmul.bf16.gmra.mxu0 %v782
  %v818 = vpop.f32.mrf.mxu0
  %v819 = vadd.f32 0.0, %v818
  %v820 = vpop.f32.mrf.mxu0
  %821 = vdwg.mxu0
  %822 = vmatpush.bf16.msra.mxu0 %v586
  %823 = vmatpush.bf16.msra.mxu0 %v582
  %824 = vmatpush.bf16.msra.mxu0 %v578
  %825 = vmatpush.bf16.msra.mxu0 %v574
  %826 = vmatpush.bf16.msra.mxu0 %v570
  %827 = vmatpush.bf16.msra.mxu0 %v566
  %828 = vmatpush.bf16.msra.mxu0 %v562
  %829 = vmatpush.bf16.msra.mxu0 %v558
  %830 = vmatmul.bf16.gmra.mxu0 %v782
  %v831 = vpop.f32.mrf.mxu0
  %v832 = vadd.f32 0.0, %v831
  %v833 = vpop.f32.mrf.mxu0
  %834 = vdwg.mxu0
  %v835 = vadd.f32 %v778, %v793
  %v836 = vadd.f32 %v779, %v806
  %v837 = vadd.f32 %v780, %v819
  %v838 = vadd.f32 %v781, %v832
  %v839 = vmul.f32 %v835, 0.5
  %v840 = vtanh.pop %v839
  %v841 = vmul.f32 %v840, 0.5
  %v842 = vadd.f32 %v841, 0.5
  %v843 = vmul.f32 %v836, 0.5
  %v844 = vtanh.pop %v843
  %v845 = vmul.f32 %v844, 0.5
  %v846 = vadd.f32 %v845, 0.5
  %v847 = vtanh.pop %v837
  %v848 = vmul.f32 %v838, 0.5
  %v849 = vtanh.pop %v848
  %v850 = vmul.f32 %v849, 0.5
  %v851 = vadd.f32 %v850, 0.5
  %v852 = vmul.f32 %v846, %v772
  %v853 = vmul.f32 %v842, %v847
  %v854 = vadd.f32 %v852, %v853
  %v855 = vtanh.pop %v854
  %v856 = vmul.f32 %v851, %v855
  %s857 = smul.u32 3, 4
  %s858 = smul.addr %s857, 8
  %s859 = scalar_lea.vmem [#allocation2], %s858
  %v860 = vld [vmem:[%s859] sm:$0xff]
  %v861 = vld [vmem:[%s859 + $0x8] sm:$0xff]
  %v862 = vld [vmem:[%s859 + $0x10] sm:$0xff]
  %v863 = vld [vmem:[%s859 + $0x18] sm:$0xff]
  %v864 = vpack.c.bf16 %v856, %v856
  %865 = vmatpush.bf16.msra.mxu0 %v583
  %866 = vmatpush.bf16.msra.mxu0 %v579
  %867 = vmatpush.bf16.msra.mxu0 %v575
  %868 = vmatpush.bf16.msra.mxu0 %v571
  %869 = vmatpush.bf16.msra.mxu0 %v567
  %870 = vmatpush.bf16.msra.mxu0 %v563
  %871 = vmatpush.bf16.msra.mxu0 %v559
  %872 = vmatpush.bf16.msra.mxu0 %v555
  %873 = vmatmul.bf16.gmra.mxu0 %v864
  %v874 = vpop.f32.mrf.mxu0
  %v875 = vadd.f32 0.0, %v874
  %v876 = vpop.f32.mrf.mxu0
  %877 = vdwg.mxu0
  %878 = vmatpush.bf16.msra.mxu0 %v584
  %879 = vmatpush.bf16.msra.mxu0 %v580
  %880 = vmatpush.bf16.msra.mxu0 %v576
  %881 = vmatpush.bf16.msra.mxu0 %v572
  %882 = vmatpush.bf16.msra.mxu0 %v568
  %883 = vmatpush.bf16.msra.mxu0 %v564
  %884 = vmatpush.bf16.msra.mxu0 %v560
  %885 = vmatpush.bf16.msra.mxu0 %v556
  %886 = vmatmul.bf16.gmra.mxu0 %v864
  %v887 = vpop.f32.mrf.mxu0
  %v888 = vadd.f32 0.0, %v887
  %v889 = vpop.f32.mrf.mxu0
  %890 = vdwg.mxu0
  %891 = vmatpush.bf16.msra.mxu0 %v585
  %892 = vmatpush.bf16.msra.mxu0 %v581
  %893 = vmatpush.bf16.msra.mxu0 %v577
  %894 = vmatpush.bf16.msra.mxu0 %v573
  %895 = vmatpush.bf16.msra.mxu0 %v569
  %896 = vmatpush.bf16.msra.mxu0 %v565
  %897 = vmatpush.bf16.msra.mxu0 %v561
  %898 = vmatpush.bf16.msra.mxu0 %v557
  %899 = vmatmul.bf16.gmra.mxu0 %v864
  %v900 = vpop.f32.mrf.mxu0
  %v901 = vadd.f32 0.0, %v900
  %v902 = vpop.f32.mrf.mxu0
  %903 = vdwg.mxu0
  %904 = vmatpush.bf16.msra.mxu0 %v586
  %905 = vmatpush.bf16.msra.mxu0 %v582
  %906 = vmatpush.bf16.msra.mxu0 %v578
  %907 = vmatpush.bf16.msra.mxu0 %v574
  %908 = vmatpush.bf16.msra.mxu0 %v570
  %909 = vmatpush.bf16.msra.mxu0 %v566
  %910 = vmatpush.bf16.msra.mxu0 %v562
  %911 = vmatpush.bf16.msra.mxu0 %v558
  %912 = vmatmul.bf16.gmra.mxu0 %v864
  %v913 = vpop.f32.mrf.mxu0
  %v914 = vadd.f32 0.0, %v913
  %v915 = vpop.f32.mrf.mxu0
  %916 = vdwg.mxu0
  %v917 = vadd.f32 %v860, %v875
  %v918 = vadd.f32 %v861, %v888
  %v919 = vadd.f32 %v862, %v901
  %v920 = vadd.f32 %v863, %v914
  %v921 = vmul.f32 %v917, 0.5
  %v922 = vtanh.pop %v921
  %v923 = vmul.f32 %v922, 0.5
  %v924 = vadd.f32 %v923, 0.5
  %v925 = vmul.f32 %v918, 0.5
  %v926 = vtanh.pop %v925
  %v927 = vmul.f32 %v926, 0.5
  %v928 = vadd.f32 %v927, 0.5
  %v929 = vtanh.pop %v919
  %v930 = vmul.f32 %v920, 0.5
  %v931 = vtanh.pop %v930
  %v932 = vmul.f32 %v931, 0.5
  %v933 = vadd.f32 %v932, 0.5
  %v934 = vmul.f32 %v928, %v854
  %v935 = vmul.f32 %v924, %v929
  %v936 = vadd.f32 %v934, %v935
  %v937 = vtanh.pop %v936
  %v938 = vmul.f32 %v933, %v937
  %s939 = smul.u32 4, 4
  %s940 = smul.addr %s939, 8
  %s941 = scalar_lea.vmem [#allocation2], %s940
  %v942 = vld [vmem:[%s941] sm:$0xff]
  %v943 = vld [vmem:[%s941 + $0x8] sm:$0xff]
  %v944 = vld [vmem:[%s941 + $0x10] sm:$0xff]
  %v945 = vld [vmem:[%s941 + $0x18] sm:$0xff]
  %v946 = vpack.c.bf16 %v938, %v938
  %947 = vmatpush.bf16.msra.mxu0 %v583
  %948 = vmatpush.bf16.msra.mxu0 %v579
  %949 = vmatpush.bf16.msra.mxu0 %v575
  %950 = vmatpush.bf16.msra.mxu0 %v571
  %951 = vmatpush.bf16.msra.mxu0 %v567
  %952 = vmatpush.bf16.msra.mxu0 %v563
  %953 = vmatpush.bf16.msra.mxu0 %v559
  %954 = vmatpush.bf16.msra.mxu0 %v555
  %955 = vmatmul.bf16.gmra.mxu0 %v946
  %v956 = vpop.f32.mrf.mxu0
  %v957 = vadd.f32 0.0, %v956
  %v958 = vpop.f32.mrf.mxu0
  %959 = vdwg.mxu0
  %960 = vmatpush.bf16.msra.mxu0 %v584
  %961 = vmatpush.bf16.msra.mxu0 %v580
  %962 = vmatpush.bf16.msra.mxu0 %v576
  %963 = vmatpush.bf16.msra.mxu0 %v572
  %964 = vmatpush.bf16.msra.mxu0 %v568
  %965 = vmatpush.bf16.msra.mxu0 %v564
  %966 = vmatpush.bf16.msra.mxu0 %v560
  %967 = vmatpush.bf16.msra.mxu0 %v556
  %968 = vmatmul.bf16.gmra.mxu0 %v946
  %v969 = vpop.f32.mrf.mxu0
  %v970 = vadd.f32 0.0, %v969
  %v971 = vpop.f32.mrf.mxu0
  %972 = vdwg.mxu0
  %973 = vmatpush.bf16.msra.mxu0 %v585
  %974 = vmatpush.bf16.msra.mxu0 %v581
  %975 = vmatpush.bf16.msra.mxu0 %v577
  %976 = vmatpush.bf16.msra.mxu0 %v573
  %977 = vmatpush.bf16.msra.mxu0 %v569
  %978 = vmatpush.bf16.msra.mxu0 %v565
  %979 = vmatpush.bf16.msra.mxu0 %v561
  %980 = vmatpush.bf16.msra.mxu0 %v557
  %981 = vmatmul.bf16.gmra.mxu0 %v946
  %v982 = vpop.f32.mrf.mxu0
  %v983 = vadd.f32 0.0, %v982
  %v984 = vpop.f32.mrf.mxu0
  %985 = vdwg.mxu0
  %986 = vmatpush.bf16.msra.mxu0 %v586
  %987 = vmatpush.bf16.msra.mxu0 %v582
  %988 = vmatpush.bf16.msra.mxu0 %v578
  %989 = vmatpush.bf16.msra.mxu0 %v574
  %990 = vmatpush.bf16.msra.mxu0 %v570
  %991 = vmatpush.bf16.msra.mxu0 %v566
  %992 = vmatpush.bf16.msra.mxu0 %v562
  %993 = vmatpush.bf16.msra.mxu0 %v558
  %994 = vmatmul.bf16.gmra.mxu0 %v946
  %v995 = vpop.f32.mrf.mxu0
  %v996 = vadd.f32 0.0, %v995
  %v997 = vpop.f32.mrf.mxu0
  %998 = vdwg.mxu0
  %v999 = vadd.f32 %v942, %v957
  %v1000 = vadd.f32 %v943, %v970
  %v1001 = vadd.f32 %v944, %v983
  %v1002 = vadd.f32 %v945, %v996
  %v1003 = vmul.f32 %v999, 0.5
  %v1004 = vtanh.pop %v1003
  %v1005 = vmul.f32 %v1004, 0.5
  %v1006 = vadd.f32 %v1005, 0.5
  %v1007 = vmul.f32 %v1000, 0.5
  %v1008 = vtanh.pop %v1007
  %v1009 = vmul.f32 %v1008, 0.5
  %v1010 = vadd.f32 %v1009, 0.5
  %v1011 = vtanh.pop %v1001
  %v1012 = vmul.f32 %v1002, 0.5
  %v1013 = vtanh.pop %v1012
  %v1014 = vmul.f32 %v1013, 0.5
  %v1015 = vadd.f32 %v1014, 0.5
  %v1016 = vmul.f32 %v1010, %v936
  %v1017 = vmul.f32 %v1006, %v1011
  %v1018 = vadd.f32 %v1016, %v1017
  %v1019 = vtanh.pop %v1018
  %v1020 = vmul.f32 %v1015, %v1019
  %s1021 = smul.u32 5, 4
  %s1022 = smul.addr %s1021, 8
  %s1023 = scalar_lea.vmem [#allocation2], %s1022
  %v1024 = vld [vmem:[%s1023] sm:$0xff]
  %v1025 = vld [vmem:[%s1023 + $0x8] sm:$0xff]
  %v1026 = vld [vmem:[%s1023 + $0x10] sm:$0xff]
  %v1027 = vld [vmem:[%s1023 + $0x18] sm:$0xff]
  %v1028 = vpack.c.bf16 %v1020, %v1020
  %1029 = vmatpush.bf16.msra.mxu0 %v583
  %1030 = vmatpush.bf16.msra.mxu0 %v579
  %1031 = vmatpush.bf16.msra.mxu0 %v575
  %1032 = vmatpush.bf16.msra.mxu0 %v571
  %1033 = vmatpush.bf16.msra.mxu0 %v567
  %1034 = vmatpush.bf16.msra.mxu0 %v563
  %1035 = vmatpush.bf16.msra.mxu0 %v559
  %1036 = vmatpush.bf16.msra.mxu0 %v555
  %1037 = vmatmul.bf16.gmra.mxu0 %v1028
  %v1038 = vpop.f32.mrf.mxu0
  %v1039 = vadd.f32 0.0, %v1038
  %v1040 = vpop.f32.mrf.mxu0
  %1041 = vdwg.mxu0
  %1042 = vmatpush.bf16.msra.mxu0 %v584
  %1043 = vmatpush.bf16.msra.mxu0 %v580
  %1044 = vmatpush.bf16.msra.mxu0 %v576
  %1045 = vmatpush.bf16.msra.mxu0 %v572
  %1046 = vmatpush.bf16.msra.mxu0 %v568
  %1047 = vmatpush.bf16.msra.mxu0 %v564
  %1048 = vmatpush.bf16.msra.mxu0 %v560
  %1049 = vmatpush.bf16.msra.mxu0 %v556
  %1050 = vmatmul.bf16.gmra.mxu0 %v1028
  %v1051 = vpop.f32.mrf.mxu0
  %v1052 = vadd.f32 0.0, %v1051
  %v1053 = vpop.f32.mrf.mxu0
  %1054 = vdwg.mxu0
  %1055 = vmatpush.bf16.msra.mxu0 %v585
  %1056 = vmatpush.bf16.msra.mxu0 %v581
  %1057 = vmatpush.bf16.msra.mxu0 %v577
  %1058 = vmatpush.bf16.msra.mxu0 %v573
  %1059 = vmatpush.bf16.msra.mxu0 %v569
  %1060 = vmatpush.bf16.msra.mxu0 %v565
  %1061 = vmatpush.bf16.msra.mxu0 %v561
  %1062 = vmatpush.bf16.msra.mxu0 %v557
  %1063 = vmatmul.bf16.gmra.mxu0 %v1028
  %v1064 = vpop.f32.mrf.mxu0
  %v1065 = vadd.f32 0.0, %v1064
  %v1066 = vpop.f32.mrf.mxu0
  %1067 = vdwg.mxu0
  %1068 = vmatpush.bf16.msra.mxu0 %v586
  %1069 = vmatpush.bf16.msra.mxu0 %v582
  %1070 = vmatpush.bf16.msra.mxu0 %v578
  %1071 = vmatpush.bf16.msra.mxu0 %v574
  %1072 = vmatpush.bf16.msra.mxu0 %v570
  %1073 = vmatpush.bf16.msra.mxu0 %v566
  %1074 = vmatpush.bf16.msra.mxu0 %v562
  %1075 = vmatpush.bf16.msra.mxu0 %v558
  %1076 = vmatmul.bf16.gmra.mxu0 %v1028
  %v1077 = vpop.f32.mrf.mxu0
  %v1078 = vadd.f32 0.0, %v1077
  %v1079 = vpop.f32.mrf.mxu0
  %1080 = vdwg.mxu0
  %v1081 = vadd.f32 %v1024, %v1039
  %v1082 = vadd.f32 %v1025, %v1052
  %v1083 = vadd.f32 %v1026, %v1065
  %v1084 = vadd.f32 %v1027, %v1078
  %v1085 = vmul.f32 %v1081, 0.5
  %v1086 = vtanh.pop %v1085
  %v1087 = vmul.f32 %v1086, 0.5
  %v1088 = vadd.f32 %v1087, 0.5
  %v1089 = vmul.f32 %v1082, 0.5
  %v1090 = vtanh.pop %v1089
  %v1091 = vmul.f32 %v1090, 0.5
  %v1092 = vadd.f32 %v1091, 0.5
  %v1093 = vtanh.pop %v1083
  %v1094 = vmul.f32 %v1084, 0.5
  %v1095 = vtanh.pop %v1094
  %v1096 = vmul.f32 %v1095, 0.5
  %v1097 = vadd.f32 %v1096, 0.5
  %v1098 = vmul.f32 %v1092, %v1018
  %v1099 = vmul.f32 %v1088, %v1093
  %v1100 = vadd.f32 %v1098, %v1099
  %v1101 = vtanh.pop %v1100
  %v1102 = vmul.f32 %v1097, %v1101
  %s1103 = smul.u32 6, 4
  %s1104 = smul.addr %s1103, 8
  %s1105 = scalar_lea.vmem [#allocation2], %s1104
  %v1106 = vld [vmem:[%s1105] sm:$0xff]
  %v1107 = vld [vmem:[%s1105 + $0x8] sm:$0xff]
  %v1108 = vld [vmem:[%s1105 + $0x10] sm:$0xff]
  %v1109 = vld [vmem:[%s1105 + $0x18] sm:$0xff]
  %v1110 = vpack.c.bf16 %v1102, %v1102
  %1111 = vmatpush.bf16.msra.mxu0 %v583
  %1112 = vmatpush.bf16.msra.mxu0 %v579
  %1113 = vmatpush.bf16.msra.mxu0 %v575
  %1114 = vmatpush.bf16.msra.mxu0 %v571
  %1115 = vmatpush.bf16.msra.mxu0 %v567
  %1116 = vmatpush.bf16.msra.mxu0 %v563
  %1117 = vmatpush.bf16.msra.mxu0 %v559
  %1118 = vmatpush.bf16.msra.mxu0 %v555
  %1119 = vmatmul.bf16.gmra.mxu0 %v1110
  %v1120 = vpop.f32.mrf.mxu0
  %v1121 = vadd.f32 0.0, %v1120
  %v1122 = vpop.f32.mrf.mxu0
  %1123 = vdwg.mxu0
  %1124 = vmatpush.bf16.msra.mxu0 %v584
  %1125 = vmatpush.bf16.msra.mxu0 %v580
  %1126 = vmatpush.bf16.msra.mxu0 %v576
  %1127 = vmatpush.bf16.msra.mxu0 %v572
  %1128 = vmatpush.bf16.msra.mxu0 %v568
  %1129 = vmatpush.bf16.msra.mxu0 %v564
  %1130 = vmatpush.bf16.msra.mxu0 %v560
  %1131 = vmatpush.bf16.msra.mxu0 %v556
  %1132 = vmatmul.bf16.gmra.mxu0 %v1110
  %v1133 = vpop.f32.mrf.mxu0
  %v1134 = vadd.f32 0.0, %v1133
  %v1135 = vpop.f32.mrf.mxu0
  %1136 = vdwg.mxu0
  %1137 = vmatpush.bf16.msra.mxu0 %v585
  %1138 = vmatpush.bf16.msra.mxu0 %v581
  %1139 = vmatpush.bf16.msra.mxu0 %v577
  %1140 = vmatpush.bf16.msra.mxu0 %v573
  %1141 = vmatpush.bf16.msra.mxu0 %v569
  %1142 = vmatpush.bf16.msra.mxu0 %v565
  %1143 = vmatpush.bf16.msra.mxu0 %v561
  %1144 = vmatpush.bf16.msra.mxu0 %v557
  %1145 = vmatmul.bf16.gmra.mxu0 %v1110
  %v1146 = vpop.f32.mrf.mxu0
  %v1147 = vadd.f32 0.0, %v1146
  %v1148 = vpop.f32.mrf.mxu0
  %1149 = vdwg.mxu0
  %1150 = vmatpush.bf16.msra.mxu0 %v586
  %1151 = vmatpush.bf16.msra.mxu0 %v582
  %1152 = vmatpush.bf16.msra.mxu0 %v578
  %1153 = vmatpush.bf16.msra.mxu0 %v574
  %1154 = vmatpush.bf16.msra.mxu0 %v570
  %1155 = vmatpush.bf16.msra.mxu0 %v566
  %1156 = vmatpush.bf16.msra.mxu0 %v562
  %1157 = vmatpush.bf16.msra.mxu0 %v558
  %1158 = vmatmul.bf16.gmra.mxu0 %v1110
  %v1159 = vpop.f32.mrf.mxu0
  %v1160 = vadd.f32 0.0, %v1159
  %v1161 = vpop.f32.mrf.mxu0
  %1162 = vdwg.mxu0
  %v1163 = vadd.f32 %v1106, %v1121
  %v1164 = vadd.f32 %v1107, %v1134
  %v1165 = vadd.f32 %v1108, %v1147
  %v1166 = vadd.f32 %v1109, %v1160
  %v1167 = vmul.f32 %v1163, 0.5
  %v1168 = vtanh.pop %v1167
  %v1169 = vmul.f32 %v1168, 0.5
  %v1170 = vadd.f32 %v1169, 0.5
  %v1171 = vmul.f32 %v1164, 0.5
  %v1172 = vtanh.pop %v1171
  %v1173 = vmul.f32 %v1172, 0.5
  %v1174 = vadd.f32 %v1173, 0.5
  %v1175 = vtanh.pop %v1165
  %v1176 = vmul.f32 %v1166, 0.5
  %v1177 = vtanh.pop %v1176
  %v1178 = vmul.f32 %v1177, 0.5
  %v1179 = vadd.f32 %v1178, 0.5
  %v1180 = vmul.f32 %v1174, %v1100
  %v1181 = vmul.f32 %v1170, %v1175
  %v1182 = vadd.f32 %v1180, %v1181
  %v1183 = vtanh.pop %v1182
  %v1184 = vmul.f32 %v1179, %v1183
  %s1185 = smul.u32 7, 4
  %s1186 = smul.addr %s1185, 8
  %s1187 = scalar_lea.vmem [#allocation2], %s1186
  %v1188 = vld [vmem:[%s1187] sm:$0xff]
  %v1189 = vld [vmem:[%s1187 + $0x8] sm:$0xff]
  %v1190 = vld [vmem:[%s1187 + $0x10] sm:$0xff]
  %v1191 = vld [vmem:[%s1187 + $0x18] sm:$0xff]
  %v1192 = vpack.c.bf16 %v1184, %v1184
  %1193 = vmatpush.bf16.msra.mxu0 %v583
  %1194 = vmatpush.bf16.msra.mxu0 %v579
  %1195 = vmatpush.bf16.msra.mxu0 %v575
  %1196 = vmatpush.bf16.msra.mxu0 %v571
  %1197 = vmatpush.bf16.msra.mxu0 %v567
  %1198 = vmatpush.bf16.msra.mxu0 %v563
  %1199 = vmatpush.bf16.msra.mxu0 %v559
  %1200 = vmatpush.bf16.msra.mxu0 %v555
  %1201 = vmatmul.bf16.gmra.mxu0 %v1192
  %v1202 = vpop.f32.mrf.mxu0
  %v1203 = vadd.f32 0.0, %v1202
  %v1204 = vpop.f32.mrf.mxu0
  %1205 = vdwg.mxu0
  %1206 = vmatpush.bf16.msra.mxu0 %v584
  %1207 = vmatpush.bf16.msra.mxu0 %v580
  %1208 = vmatpush.bf16.msra.mxu0 %v576
  %1209 = vmatpush.bf16.msra.mxu0 %v572
  %1210 = vmatpush.bf16.msra.mxu0 %v568
  %1211 = vmatpush.bf16.msra.mxu0 %v564
  %1212 = vmatpush.bf16.msra.mxu0 %v560
  %1213 = vmatpush.bf16.msra.mxu0 %v556
  %1214 = vmatmul.bf16.gmra.mxu0 %v1192
  %v1215 = vpop.f32.mrf.mxu0
  %v1216 = vadd.f32 0.0, %v1215
  %v1217 = vpop.f32.mrf.mxu0
  %1218 = vdwg.mxu0
  %1219 = vmatpush.bf16.msra.mxu0 %v585
  %1220 = vmatpush.bf16.msra.mxu0 %v581
  %1221 = vmatpush.bf16.msra.mxu0 %v577
  %1222 = vmatpush.bf16.msra.mxu0 %v573
  %1223 = vmatpush.bf16.msra.mxu0 %v569
  %1224 = vmatpush.bf16.msra.mxu0 %v565
  %1225 = vmatpush.bf16.msra.mxu0 %v561
  %1226 = vmatpush.bf16.msra.mxu0 %v557
  %1227 = vmatmul.bf16.gmra.mxu0 %v1192
  %v1228 = vpop.f32.mrf.mxu0
  %v1229 = vadd.f32 0.0, %v1228
  %v1230 = vpop.f32.mrf.mxu0
  %1231 = vdwg.mxu0
  %1232 = vmatpush.bf16.msra.mxu0 %v586
  %1233 = vmatpush.bf16.msra.mxu0 %v582
  %1234 = vmatpush.bf16.msra.mxu0 %v578
  %1235 = vmatpush.bf16.msra.mxu0 %v574
  %1236 = vmatpush.bf16.msra.mxu0 %v570
  %1237 = vmatpush.bf16.msra.mxu0 %v566
  %1238 = vmatpush.bf16.msra.mxu0 %v562
  %1239 = vmatpush.bf16.msra.mxu0 %v558
  %1240 = vmatmul.bf16.gmra.mxu0 %v1192
  %v1241 = vpop.f32.mrf.mxu0
  %v1242 = vadd.f32 0.0, %v1241
  %v1243 = vpop.f32.mrf.mxu0
  %1244 = vdwg.mxu0
  %v1245 = vadd.f32 %v1188, %v1203
  %v1246 = vadd.f32 %v1189, %v1216
  %v1247 = vadd.f32 %v1190, %v1229
  %v1248 = vadd.f32 %v1191, %v1242
  %v1249 = vmul.f32 %v1245, 0.5
  %v1250 = vtanh.pop %v1249
  %v1251 = vmul.f32 %v1250, 0.5
  %v1252 = vadd.f32 %v1251, 0.5
  %v1253 = vmul.f32 %v1246, 0.5
  %v1254 = vtanh.pop %v1253
  %v1255 = vmul.f32 %v1254, 0.5
  %v1256 = vadd.f32 %v1255, 0.5
  %v1257 = vtanh.pop %v1247
  %v1258 = vmul.f32 %v1248, 0.5
  %v1259 = vtanh.pop %v1258
  %v1260 = vmul.f32 %v1259, 0.5
  %v1261 = vadd.f32 %v1260, 0.5
  %v1262 = vmul.f32 %v1256, %v1182
  %v1263 = vmul.f32 %v1252, %v1257
  %v1264 = vadd.f32 %v1262, %v1263
  %v1265 = vtanh.pop %v1264
  %v1266 = vmul.f32 %v1261, %v1265
  %v1267 = vpack.c.bf16 %v1266, %v1266
  %v1269 = vperm.slane %v102, 0
  %v1287 = vunpack.c.l.b16 %v85
  %v1288 = vunpack.c.l.b16 %v86
  %v1289 = vunpack.c.l.b16 %v87
  %v1290 = vunpack.c.l.b16 %v88
  %v1291 = vunpack.c.l.b16 %v89
  %v1292 = vunpack.c.l.b16 %v90
  %v1293 = vunpack.c.l.b16 %v91
  %v1294 = vunpack.c.l.b16 %v92
  %v1295 = vunpack.c.l.b16 %v93
  %v1296 = vunpack.c.l.b16 %v94
  %v1297 = vunpack.c.l.b16 %v95
  %v1298 = vunpack.c.l.b16 %v96
  %v1299 = vunpack.c.l.b16 %v97
  %v1300 = vunpack.c.l.b16 %v98
  %v1301 = vunpack.c.l.b16 %v99
  %v1302 = vunpack.c.l.b16 %v100
  %v1303 = vpack.c.b16 %v1288, %v1287
  %v1304 = vpack.c.b16 %v1290, %v1289
  %v1305 = vpack.c.b16 %v1292, %v1291
  %v1306 = vpack.c.b16 %v1294, %v1293
  %v1307 = vpack.c.b16 %v1296, %v1295
  %v1308 = vpack.c.b16 %v1298, %v1297
  %v1309 = vpack.c.b16 %v1300, %v1299
  %v1310 = vpack.c.b16 %v1302, %v1301
  %1319 = vmatpush.bf16.msra.mxu0 %v1310
  %1320 = vmatpush.bf16.msra.mxu0 %v1309
  %1321 = vmatpush.bf16.msra.mxu0 %v1308
  %1322 = vmatpush.bf16.msra.mxu0 %v1307
  %1323 = vmatpush.bf16.msra.mxu0 %v1306
  %1324 = vmatpush.bf16.msra.mxu0 %v1305
  %1325 = vmatpush.bf16.msra.mxu0 %v1304
  %1326 = vmatpush.bf16.msra.mxu0 %v1303
  %1327 = vmatmul.bf16.gmra.mxu0 %v1267
  %v1328 = vpop.f32.mrf.mxu0
  %v1329 = vadd.f32 %v1269, %v1328
  %v1330 = vpop.f32.mrf.mxu0
  %1331 = vdwg.mxu0
  %1332 = vst [vmem:[%s5] sm:$0xff] %v1329
  // Predicated region
  $region22: #{forecaster_pallas.1} parent=0 // pred_check
    _
  $region23: #{forecaster_pallas.1} parent=0 // pred_check_branch
    %1334 = sbr.rel (0) target = $region25
  $region24: #{forecaster_pallas.1} parent=0 // pred_region
    _
  $region25: #{forecaster_pallas.1} parent=0 // pred_fallthru
    _
  // Predicated region
  $region26: #{forecaster_pallas.1} parent=0 // pred_check
    _
  $region27: #{forecaster_pallas.1} parent=0 // pred_check_branch
    %1336 = sbr.rel (0) target = $region29
  $region28: #{forecaster_pallas.1} parent=0 // pred_region
    _
  $region29: #{forecaster_pallas.1} parent=0 // pred_fallthru
    _

</llo_original>
